<compile_context>
chip_gen: v5e
topology: v5e:2x2
jax: 0.10.0
libtpu: 0.0.40
codegen_flags: <defaults>
</compile_context>

<pallas_src>
import math

import jax
import jax.numpy as jnp
from jax.experimental import pallas as pl
from jax.experimental.pallas import tpu as pltpu  # noqa: F401  (TPU backend)

# ---- config (matches MHAtt's C) ------------------------------------------
HIDDEN_SIZE = 32
MULTI_HEAD = 4
HIDDEN_SIZE_HEAD = HIDDEN_SIZE // MULTI_HEAD  # 8
DROPOUT_R = 0.1  # TODO(synk): dropout is identity in eval mode; not applied here.

B = 2
S = 8


def _mha_kernel(q_ref, k_ref, v_ref, mask_ref,
                wq_ref, bq_ref, wk_ref, bk_ref, wv_ref, bv_ref,
                wm_ref, bm_ref, o_ref):
    f32 = jnp.float32
    nh, dh, H = MULTI_HEAD, HIDDEN_SIZE_HEAD, HIDDEN_SIZE
    Bn = mask_ref.shape[0]
    Sn = mask_ref.shape[-1]
    G = Bn * nh

    # --- Q/K/V projections: three lane-dense [B*S, H] @ [H, H] matmuls ------
    qp = jnp.dot(q_ref[...], wq_ref[...], preferred_element_type=f32) + bq_ref[...]
    kp = jnp.dot(k_ref[...], wk_ref[...], preferred_element_type=f32) + bk_ref[...]
    vp = jnp.dot(v_ref[...], wv_ref[...], preferred_element_type=f32) + bv_ref[...]

    # Scale q once on the full [B*S, H] tile (covers every head at once).
    qp = qp * (1.0 / math.sqrt(dh))

    # --- split heads: [B*S, H] -> [B*nh, S, dh] (in-vreg repack, no MXU work)
    def split_heads(x):
        return (x.reshape(Bn, Sn, nh, dh)
                 .transpose(0, 2, 1, 3)
                 .reshape(G, Sn, dh))

    qh, kh, vh = split_heads(qp), split_heads(kp), split_heads(vp)

    # --- attention scores + additive mask bias + stable softmax --------------
    # scores[g] = qh[g] @ kh[g]^T, contraction on the last dim of both
    # operands (no explicit transpose), batched over G = B*nh.
    scores = jnp.einsum("gqd,gkd->gqk", qh, kh, preferred_element_type=f32)

    # masked_fill(mask, -1e9) as an additive bias, computed once on the VPU.
    mb = jnp.where(mask_ref[...] > 0.5, f32(-1e9), f32(0.0))          # [B,1,S]
    mb_g = jnp.broadcast_to(mb[:, None, :, :], (Bn, nh, 1, Sn)).reshape(G, 1, Sn)
    scores = scores + mb_g

    m = jnp.max(scores, axis=-1, keepdims=True)
    e = jnp.exp(scores - m)
    att = e / jnp.sum(e, axis=-1, keepdims=True)   # exact divide (bit-close softmax)
    # TODO(synk): dropout on the attention map is identity in eval mode; omitted.

    ctx = jnp.einsum("gqk,gkd->gqd", att, vh, preferred_element_type=f32)  # [G,S,dh]

    # --- merge heads back onto a 32-lane span, single [B*S,H]@[H,H] matmul ---
    ctx2d = (ctx.reshape(Bn, nh, Sn, dh)
                .transpose(0, 2, 1, 3)
                .reshape(Bn * Sn, H))
    out = jnp.dot(ctx2d, wm_ref[...], preferred_element_type=f32) + bm_ref[...]
    o_ref[...] = out.astype(o_ref.dtype)


def mhatt_forward(v, k, q, mask, params):
    """v, k, q: [B, S, H]; mask: [B, 1, S] float (1.0 = masked key position).

    `params` must already be in kernel layout (weights [in, out], biases
    [1, H]) — do that transposition once at parameter-setup time, not per call.
    """
    wq, bq, wk, bk, wv, bv, wm, bm = params
    Bn, Sn, Hn = q.shape

    # Free, contiguous reshapes only — no per-call tiling / broadcasting.
    q2 = q.reshape(Bn * Sn, Hn)
    k2 = k.reshape(Bn * Sn, Hn)
    v2 = v.reshape(Bn * Sn, Hn)

    # Single kernel invocation (no grid): the whole problem (~10 KB) is
    # VMEM-resident at once; no per-step pipeline overhead.
    out2d = pl.pallas_call(
        _mha_kernel,
        out_shape=jax.ShapeDtypeStruct((Bn * Sn, Hn), q.dtype),
    )(q2, k2, v2, mask.astype(jnp.float32),
      wq, bq, wk, bk, wv, bv, wm, bm)

    return out2d.reshape(Bn, Sn, Hn)


def _reference(v, k, q, mask, params):
    """Pure-JAX reference mirroring the PyTorch forward (eval mode)."""
    wq, bq, wk, bk, wv, bv, wm, bm = params
    Bn, Sn, Hn = q.shape
    nh, dh = MULTI_HEAD, HIDDEN_SIZE_HEAD

    def proj(x, w, b):
        return x @ w + b  # w already transposed to [in, out]

    def split(x):  # [B,S,H] -> [B,nh,S,dh]
        return x.reshape(Bn, Sn, nh, dh).transpose(0, 2, 1, 3)

    qp, kp, vp = split(proj(q, wq, bq)), split(proj(k, wk, bk)), split(proj(v, wv, bv))
    scores = jnp.einsum("bhqd,bhkd->bhqk", qp, kp) / math.sqrt(dh)
    m = (mask[:, None, :, :] > 0.5)  # [B,1,1,S]
    scores = jnp.where(m, -1e9, scores)
    att = jax.nn.softmax(scores, axis=-1)
    out = jnp.einsum("bhqk,bhkd->bhqd", att, vp)
    out = out.transpose(0, 2, 1, 3).reshape(Bn, Sn, Hn)
    return out @ wm + bm


if __name__ == "__main__":
    key = jax.random.PRNGKey(0)
    keys = jax.random.split(key, 12)

    H = HIDDEN_SIZE
    scale = 1.0 / math.sqrt(H)
    # nn.Linear weights are stored [out, in]; transpose ONCE at setup time to
    # [in, out] so the kernel computes x @ W + b directly (no per-call tiling).
    wq = (jax.random.normal(keys[0], (H, H), jnp.float32) * scale).T
    bq = jax.random.normal(keys[1], (1, H), jnp.float32) * scale
    wk = (jax.random.normal(keys[2], (H, H), jnp.float32) * scale).T
    bk = jax.random.normal(keys[3], (1, H), jnp.float32) * scale
    wv = (jax.random.normal(keys[4], (H, H), jnp.float32) * scale).T
    bv = jax.random.normal(keys[5], (1, H), jnp.float32) * scale
    wm = (jax.random.normal(keys[6], (H, H), jnp.float32) * scale).T
    bm = jax.random.normal(keys[7], (1, H), jnp.float32) * scale
    params = (wq, bq, wk, bk, wv, bv, wm, bm)

    q = jax.random.normal(keys[8], (B, S, H), jnp.float32)
    k = jax.random.normal(keys[9], (B, S, H), jnp.float32)
    v = jax.random.normal(keys[10], (B, S, H), jnp.float32)
    # Mask the last two key positions of batch 1, nothing in batch 0.
    mask = jnp.zeros((B, 1, S), jnp.float32).at[1, 0, -2:].set(1.0)

    out = jax.block_until_ready(mhatt_forward(v, k, q, mask, params))
    ref = _reference(v, k, q, mask, params)

    assert out.shape == (B, S, H)
    # Exact softmax divide -> only f32 accumulation-order noise (~1e-6) remains.
    assert jnp.allclose(out, ref, atol=1e-3, rtol=1e-3), \
        f"max abs err {jnp.max(jnp.abs(out - ref))}"
    print("KERNEL_OK")
</pallas_src>

<mosaic_0001>
module attributes {stable_mosaic.version = 11 : i64} {
  func.func @_mha_kernel(%arg0: memref<16x32xf32, #tpu.memory_space<vmem>>, %arg1: memref<16x32xf32, #tpu.memory_space<vmem>>, %arg2: memref<16x32xf32, #tpu.memory_space<vmem>>, %arg3: memref<2x1x8xf32, #tpu.memory_space<vmem>>, %arg4: memref<32x32xf32, #tpu.memory_space<vmem>>, %arg5: memref<1x32xf32, #tpu.memory_space<vmem>>, %arg6: memref<32x32xf32, #tpu.memory_space<vmem>>, %arg7: memref<1x32xf32, #tpu.memory_space<vmem>>, %arg8: memref<32x32xf32, #tpu.memory_space<vmem>>, %arg9: memref<1x32xf32, #tpu.memory_space<vmem>>, %arg10: memref<32x32xf32, #tpu.memory_space<vmem>>, %arg11: memref<1x32xf32, #tpu.memory_space<vmem>>, %arg12: memref<16x32xf32, #tpu.memory_space<vmem>>) attributes {dimension_semantics = [], scalar_prefetch = 0 : i64, scratch_operands = 0 : i64, tpu.core_type = #tpu.core_type<tc>} {
    %c0 = arith.constant 0 : index
    %c0_0 = arith.constant 0 : index
    %0 = vector.load %arg0[%c0, %c0_0] : memref<16x32xf32, #tpu.memory_space<vmem>>, vector<16x32xf32>
    %c0_1 = arith.constant 0 : index
    %c0_2 = arith.constant 0 : index
    %1 = vector.load %arg4[%c0_1, %c0_2] : memref<32x32xf32, #tpu.memory_space<vmem>>, vector<32x32xf32>
    %cst = arith.constant dense<0.000000e+00> : vector<16x32xf32>
    %2 = tpu.matmul %0, %1, %cst {dimension_numbers = #tpu.dot_dimension_numbers<[1], [0], [0], [1], [0, 0, 1, 1], [], []>} : vector<16x32xf32>, vector<32x32xf32>, vector<16x32xf32> -> vector<16x32xf32>
    %c0_3 = arith.constant 0 : index
    %c0_4 = arith.constant 0 : index
    %3 = vector.load %arg5[%c0_3, %c0_4] : memref<1x32xf32, #tpu.memory_space<vmem>>, vector<1x32xf32>
    %4 = vector.broadcast %3 : vector<1x32xf32> to vector<16x32xf32>
    %5 = arith.addf %2, %4 : vector<16x32xf32>
    %c0_5 = arith.constant 0 : index
    %c0_6 = arith.constant 0 : index
    %6 = vector.load %arg1[%c0_5, %c0_6] : memref<16x32xf32, #tpu.memory_space<vmem>>, vector<16x32xf32>
    %c0_7 = arith.constant 0 : index
    %c0_8 = arith.constant 0 : index
    %7 = vector.load %arg6[%c0_7, %c0_8] : memref<32x32xf32, #tpu.memory_space<vmem>>, vector<32x32xf32>
    %cst_9 = arith.constant dense<0.000000e+00> : vector<16x32xf32>
    %8 = tpu.matmul %6, %7, %cst_9 {dimension_numbers = #tpu.dot_dimension_numbers<[1], [0], [0], [1], [0, 0, 1, 1], [], []>} : vector<16x32xf32>, vector<32x32xf32>, vector<16x32xf32> -> vector<16x32xf32>
    %c0_10 = arith.constant 0 : index
    %c0_11 = arith.constant 0 : index
    %9 = vector.load %arg7[%c0_10, %c0_11] : memref<1x32xf32, #tpu.memory_space<vmem>>, vector<1x32xf32>
    %10 = vector.broadcast %9 : vector<1x32xf32> to vector<16x32xf32>
    %11 = arith.addf %8, %10 : vector<16x32xf32>
    %c0_12 = arith.constant 0 : index
    %c0_13 = arith.constant 0 : index
    %12 = vector.load %arg2[%c0_12, %c0_13] : memref<16x32xf32, #tpu.memory_space<vmem>>, vector<16x32xf32>
    %c0_14 = arith.constant 0 : index
    %c0_15 = arith.constant 0 : index
    %13 = vector.load %arg8[%c0_14, %c0_15] : memref<32x32xf32, #tpu.memory_space<vmem>>, vector<32x32xf32>
    %cst_16 = arith.constant dense<0.000000e+00> : vector<16x32xf32>
    %14 = tpu.matmul %12, %13, %cst_16 {dimension_numbers = #tpu.dot_dimension_numbers<[1], [0], [0], [1], [0, 0, 1, 1], [], []>} : vector<16x32xf32>, vector<32x32xf32>, vector<16x32xf32> -> vector<16x32xf32>
    %c0_17 = arith.constant 0 : index
    %c0_18 = arith.constant 0 : index
    %15 = vector.load %arg9[%c0_17, %c0_18] : memref<1x32xf32, #tpu.memory_space<vmem>>, vector<1x32xf32>
    %16 = vector.broadcast %15 : vector<1x32xf32> to vector<16x32xf32>
    %17 = arith.addf %14, %16 : vector<16x32xf32>
    %cst_19 = arith.constant 0.353553385 : f32
    %18 = vector.broadcast %cst_19 : f32 to vector<16x32xf32>
    %19 = arith.mulf %5, %18 : vector<16x32xf32>
    %20 = vector.shape_cast %19 : vector<16x32xf32> to vector<2x8x4x8xf32>
    %21 = tpu.transpose %20, [0, 2, 1, 3] : vector<2x8x4x8xf32> -> vector<2x4x8x8xf32>
    %22 = vector.shape_cast %21 : vector<2x4x8x8xf32> to vector<8x8x8xf32>
    %23 = vector.shape_cast %11 : vector<16x32xf32> to vector<2x8x4x8xf32>
    %24 = tpu.transpose %23, [0, 2, 1, 3] : vector<2x8x4x8xf32> -> vector<2x4x8x8xf32>
    %25 = vector.shape_cast %24 : vector<2x4x8x8xf32> to vector<8x8x8xf32>
    %26 = vector.shape_cast %17 : vector<16x32xf32> to vector<2x8x4x8xf32>
    %27 = tpu.transpose %26, [0, 2, 1, 3] : vector<2x8x4x8xf32> -> vector<2x4x8x8xf32>
    %28 = vector.shape_cast %27 : vector<2x4x8x8xf32> to vector<8x8x8xf32>
    "tpu.trace_start"() <{level = 10 : i32, message = "gqd,gkd->gqk"}> : () -> ()
    %cst_20 = arith.constant dense<0.000000e+00> : vector<8x8x8xf32>
    %29 = tpu.matmul %22, %25, %cst_20 {dimension_numbers = #tpu.dot_dimension_numbers<[2], [2], [1], [1], [0, 0, 0, 1, 1, 1], [0], [0]>} : vector<8x8x8xf32>, vector<8x8x8xf32>, vector<8x8x8xf32> -> vector<8x8x8xf32>
    "tpu.trace_stop"() : () -> ()
    %c0_21 = arith.constant 0 : index
    %c0_22 = arith.constant 0 : index
    %c0_23 = arith.constant 0 : index
    %30 = vector.load %arg3[%c0_21, %c0_22, %c0_23] : memref<2x1x8xf32, #tpu.memory_space<vmem>>, vector<2x1x8xf32>
    %cst_24 = arith.constant 5.000000e-01 : f32
    %31 = vector.broadcast %cst_24 : f32 to vector<2x1x8xf32>
    %32 = arith.cmpf ogt, %30, %31 : vector<2x1x8xf32>
    %cst_25 = arith.constant -1.000000e+09 : f32
    %cst_26 = arith.constant 0.000000e+00 : f32
    %33 = vector.broadcast %cst_25 : f32 to vector<2x1x8xf32>
    %34 = vector.broadcast %cst_26 : f32 to vector<2x1x8xf32>
    %35 = arith.select %32, %33, %34 : vector<2x1x8xi1>, vector<2x1x8xf32>
    %36 = vector.shape_cast %35 : vector<2x1x8xf32> to vector<2x1x1x8xf32>
    %37 = vector.shape_cast %36 : vector<2x1x1x8xf32> to vector<2x1x1x8xf32>
    %38 = vector.broadcast %37 : vector<2x1x1x8xf32> to vector<2x4x1x8xf32>
    %39 = vector.shape_cast %38 : vector<2x4x1x8xf32> to vector<8x1x8xf32>
    %40 = vector.broadcast %39 : vector<8x1x8xf32> to vector<8x8x8xf32>
    %41 = arith.addf %29, %40 : vector<8x8x8xf32>
    %cst_27 = arith.constant dense<0xFF800000> : vector<8x8xf32>
    %42 = vector.multi_reduction <maximumf>, %41, %cst_27 [2] : vector<8x8x8xf32> to vector<8x8xf32>
    %43 = vector.shape_cast %42 : vector<8x8xf32> to vector<8x8x1xf32>
    %44 = vector.broadcast %43 : vector<8x8x1xf32> to vector<8x8x8xf32>
    %45 = arith.subf %41, %44 : vector<8x8x8xf32>
    %46 = math.exp %45 : vector<8x8x8xf32>
    %cst_28 = arith.constant dense<0.000000e+00> : vector<8x8xf32>
    %47 = vector.multi_reduction <add>, %46, %cst_28 [2] : vector<8x8x8xf32> to vector<8x8xf32>
    %48 = vector.shape_cast %47 : vector<8x8xf32> to vector<8x8x1xf32>
    %49 = vector.broadcast %48 : vector<8x8x1xf32> to vector<8x8x8xf32>
    %50 = arith.divf %46, %49 : vector<8x8x8xf32>
    "tpu.trace_start"() <{level = 10 : i32, message = "gqk,gkd->gqd"}> : () -> ()
    %cst_29 = arith.constant dense<0.000000e+00> : vector<8x8x8xf32>
    %51 = tpu.matmul %50, %28, %cst_29 {dimension_numbers = #tpu.dot_dimension_numbers<[2], [1], [1], [2], [0, 0, 0, 1, 1, 2], [0], [0]>} : vector<8x8x8xf32>, vector<8x8x8xf32>, vector<8x8x8xf32> -> vector<8x8x8xf32>
    "tpu.trace_stop"() : () -> ()
    %52 = vector.shape_cast %51 : vector<8x8x8xf32> to vector<2x4x8x8xf32>
    %53 = tpu.transpose %52, [0, 2, 1, 3] : vector<2x4x8x8xf32> -> vector<2x8x4x8xf32>
    %54 = vector.shape_cast %53 : vector<2x8x4x8xf32> to vector<16x32xf32>
    %c0_30 = arith.constant 0 : index
    %c0_31 = arith.constant 0 : index
    %55 = vector.load %arg10[%c0_30, %c0_31] : memref<32x32xf32, #tpu.memory_space<vmem>>, vector<32x32xf32>
    %cst_32 = arith.constant dense<0.000000e+00> : vector<16x32xf32>
    %56 = tpu.matmul %54, %55, %cst_32 {dimension_numbers = #tpu.dot_dimension_numbers<[1], [0], [0], [1], [0, 0, 1, 1], [], []>} : vector<16x32xf32>, vector<32x32xf32>, vector<16x32xf32> -> vector<16x32xf32>
    %c0_33 = arith.constant 0 : index
    %c0_34 = arith.constant 0 : index
    %57 = vector.load %arg11[%c0_33, %c0_34] : memref<1x32xf32, #tpu.memory_space<vmem>>, vector<1x32xf32>
    %58 = vector.broadcast %57 : vector<1x32xf32> to vector<16x32xf32>
    %59 = arith.addf %56, %58 : vector<16x32xf32>
    %c0_35 = arith.constant 0 : index
    %c0_36 = arith.constant 0 : index
    %60 = vector.load %arg12[%c0_35, %c0_36] : memref<16x32xf32, #tpu.memory_space<vmem>>, vector<16x32xf32>
    tpu.vector_store %arg12[%c0_35, %c0_36], %59 {strides = array<i32>} : memref<16x32xf32, #tpu.memory_space<vmem>>, vector<16x32xf32>,
    return
  }
}

</mosaic_0001>

<llo_original>
// kernel: tpu_custom_call.1
$region0: #{tpu_custom_call.1}
  #allocation0 [shape = 'u32[]', space=smem, size = 0x4, offset = 0x4, fixed_abs, tag = 'smem constant byte address 0x4 - core index']
  #allocation1 [shape = 'u32[72,128]{1,0:T(1,128)}', space=vmem, size = 0x9000, scoped, tag = 'internal scratch']
  %s0 = inlined_call_operand.hbm [shape: f32[16,32], index: 0, kind: input, shape index: {}]
  %s1 = inlined_call_operand.hbm [shape: f32[16,32], index: 1, kind: input, shape index: {}]
  %s2 = inlined_call_operand.hbm [shape: f32[16,32], index: 2, kind: input, shape index: {}]
  %s3 = inlined_call_operand.vmem [shape: f32[2,1,8], index: 3, kind: input, shape index: {}]
  %s4 = inlined_call_operand.hbm [shape: f32[32,32], index: 4, kind: input, shape index: {}]
  %s5 = inlined_call_operand.vmem [shape: f32[1,32], index: 5, kind: input, shape index: {}]
  %s6 = inlined_call_operand.hbm [shape: f32[32,32], index: 6, kind: input, shape index: {}]
  %s7 = inlined_call_operand.vmem [shape: f32[1,32], index: 7, kind: input, shape index: {}]
  %s8 = inlined_call_operand.hbm [shape: f32[32,32], index: 8, kind: input, shape index: {}]
  %s9 = inlined_call_operand.vmem [shape: f32[1,32], index: 9, kind: input, shape index: {}]
  %s10 = inlined_call_operand.hbm [shape: f32[32,32], index: 10, kind: input, shape index: {}]
  %s11 = inlined_call_operand.vmem [shape: f32[1,32], index: 11, kind: input, shape index: {}]
  %s12 = inlined_call_operand.hbm [shape: f32[16,32], index: 12, kind: output, shape index: {}]
  %s13 = sld [smem:[#allocation0]]
  $region86: #{tpu_custom_call.1} parent=0
    _
  %s15 = ssub.s32 1, %s13
  %s16 = scalar_select 0, %s15, %s13
  $region1: #{tpu_custom_call.1} parent=0
    #allocation2 [shape = 'u8[8192]{0}', space=vmem, size = 0x2000, scoped, tag = 'input window, operand 0, single buffered']
    #allocation3 [shape = 's32[1]{0}', space=sflag, size = 0x4, scoped, tag = 'scoped memory for tpu_custom_call.1']
    #allocation4 [shape = 's32[1]{0}', space=sflag, size = 0x4, scoped, tag = 'scoped memory for tpu_custom_call.1']
    #allocation5 [shape = 'u8[8192]{0}', space=vmem, size = 0x2000, scoped, tag = 'input window, operand 1, single buffered']
    #allocation6 [shape = 's32[1]{0}', space=sflag, size = 0x4, scoped, tag = 'scoped memory for tpu_custom_call.1']
    #allocation7 [shape = 'u8[8192]{0}', space=vmem, size = 0x2000, scoped, tag = 'input window, operand 2, single buffered']
    #allocation8 [shape = 'u8[16384]{0}', space=vmem, size = 0x4000, scoped, tag = 'input window, operand 4, single buffered']
    #allocation9 [shape = 's32[1]{0}', space=sflag, size = 0x4, scoped, tag = 'scoped memory for tpu_custom_call.1']
    #allocation10 [shape = 'u8[16384]{0}', space=vmem, size = 0x4000, scoped, tag = 'input window, operand 6, single buffered']
    #allocation11 [shape = 'u8[16384]{0}', space=vmem, size = 0x4000, scoped, tag = 'input window, operand 8, single buffered']
    #allocation12 [shape = 's32[1]{0}', space=sflag, size = 0x4, scoped, tag = 'scoped memory for tpu_custom_call.1']
    #allocation13 [shape = 'u8[16384]{0}', space=vmem, size = 0x4000, scoped, tag = 'input window, operand 10, single buffered']
    #allocation14 [shape = 'u8[8192]{0}', space=vmem, size = 0x2000, scoped, tag = 'output window, operand 0, single buffered']
    %17 = vsyncpa [#allocation3], 0
    %18 = vsyncpa [#allocation6], 0
    %19 = vsyncpa [#allocation9], 0
    %20 = vsyncpa [#allocation12], 0
    %21 = vsyncpa [#allocation4], 0
    // Predicated region
    $region2: #{tpu_custom_call.1} parent=1 // pred_check
      _
    $region3: #{tpu_custom_call.1} parent=1 // pred_check_branch
      %23 = sbr.rel (0) target = $region5
    $region4: #{tpu_custom_call.1} parent=1 // pred_region
      %25 = vsyncadd [#allocation3], 0
      %s26 = sshll.u32 %s0, 4
      %s27 = int_to_ptr.hbm [resolvable:$true] %s26
      %s28 = sshll.u32 [#allocation2], 4
      %s29 = int_to_ptr.vmem [resolvable:$true] %s28
      %34 = dma.hbm_to_vmem [thread:$0]  %s27, 256, %s29, [#allocation3], 128, 128, 8
    $region5: #{tpu_custom_call.1} parent=1 // pred_fallthru
      _
    // Predicated region
    $region6: #{tpu_custom_call.1} parent=1 // pred_check
      _
    $region7: #{tpu_custom_call.1} parent=1 // pred_check_branch
      %36 = sbr.rel (0) target = $region9
    $region8: #{tpu_custom_call.1} parent=1 // pred_region
      %38 = vsyncadd [#allocation6], 0
      %s39 = sshll.u32 %s1, 4
      %s40 = int_to_ptr.hbm [resolvable:$true] %s39
      %s41 = sshll.u32 [#allocation5], 4
      %s42 = int_to_ptr.vmem [resolvable:$true] %s41
      %47 = dma.hbm_to_vmem [thread:$0]  %s40, 256, %s42, [#allocation6], 128, 128, 8
    $region9: #{tpu_custom_call.1} parent=1 // pred_fallthru
      _
    // Predicated region
    $region10: #{tpu_custom_call.1} parent=1 // pred_check
      _
    $region11: #{tpu_custom_call.1} parent=1 // pred_check_branch
      %49 = sbr.rel (0) target = $region13
    $region12: #{tpu_custom_call.1} parent=1 // pred_region
      %51 = vsyncadd [#allocation6], 0
      %s52 = sshll.u32 %s2, 4
      %s53 = int_to_ptr.hbm [resolvable:$true] %s52
      %s54 = sshll.u32 [#allocation7], 4
      %s55 = int_to_ptr.vmem [resolvable:$true] %s54
      %60 = dma.hbm_to_vmem [thread:$0]  %s53, 256, %s55, [#allocation6], 128, 128, 8
    $region13: #{tpu_custom_call.1} parent=1 // pred_fallthru
      _
    // Predicated region
    $region14: #{tpu_custom_call.1} parent=1 // pred_check
      _
    $region15: #{tpu_custom_call.1} parent=1 // pred_check_branch
      %62 = sbr.rel (0) target = $region17
    $region16: #{tpu_custom_call.1} parent=1 // pred_region
      _
    $region17: #{tpu_custom_call.1} parent=1 // pred_fallthru
      _
    // Predicated region
    $region18: #{tpu_custom_call.1} parent=1 // pred_check
      _
    $region19: #{tpu_custom_call.1} parent=1 // pred_check_branch
      %64 = sbr.rel (0) target = $region21
    $region20: #{tpu_custom_call.1} parent=1 // pred_region
      %66 = vsyncadd [#allocation9], 0
      %s67 = sshll.u32 %s4, 4
      %s68 = int_to_ptr.hbm [resolvable:$true] %s67
      %s69 = sshll.u32 [#allocation8], 4
      %s70 = int_to_ptr.vmem [resolvable:$true] %s69
      %75 = dma.hbm_to_vmem [thread:$0]  %s68, 512, %s70, [#allocation9], 128, 128, 8
    $region21: #{tpu_custom_call.1} parent=1 // pred_fallthru
      _
    // Predicated region
    $region22: #{tpu_custom_call.1} parent=1 // pred_check
      _
    $region23: #{tpu_custom_call.1} parent=1 // pred_check_branch
      %77 = sbr.rel (0) target = $region25
    $region24: #{tpu_custom_call.1} parent=1 // pred_region
      _
    $region25: #{tpu_custom_call.1} parent=1 // pred_fallthru
      _
    // Predicated region
    $region26: #{tpu_custom_call.1} parent=1 // pred_check
      _
    $region27: #{tpu_custom_call.1} parent=1 // pred_check_branch
      %79 = sbr.rel (0) target = $region29
    $region28: #{tpu_custom_call.1} parent=1 // pred_region
      %81 = vsyncadd [#allocation9], 0
      %s82 = sshll.u32 %s6, 4
      %s83 = int_to_ptr.hbm [resolvable:$true] %s82
      %s84 = sshll.u32 [#allocation10], 4
      %s85 = int_to_ptr.vmem [resolvable:$true] %s84
      %90 = dma.hbm_to_vmem [thread:$0]  %s83, 512, %s85, [#allocation9], 128, 128, 8
    $region29: #{tpu_custom_call.1} parent=1 // pred_fallthru
      _
    // Predicated region
    $region30: #{tpu_custom_call.1} parent=1 // pred_check
      _
    $region31: #{tpu_custom_call.1} parent=1 // pred_check_branch
      %92 = sbr.rel (0) target = $region33
    $region32: #{tpu_custom_call.1} parent=1 // pred_region
      _
    $region33: #{tpu_custom_call.1} parent=1 // pred_fallthru
      _
    // Predicated region
    $region34: #{tpu_custom_call.1} parent=1 // pred_check
      _
    $region35: #{tpu_custom_call.1} parent=1 // pred_check_branch
      %94 = sbr.rel (0) target = $region37
    $region36: #{tpu_custom_call.1} parent=1 // pred_region
      %96 = vsyncadd [#allocation12], 0
      %s97 = sshll.u32 %s8, 4
      %s98 = int_to_ptr.hbm [resolvable:$true] %s97
      %s99 = sshll.u32 [#allocation11], 4
      %s100 = int_to_ptr.vmem [resolvable:$true] %s99
      %105 = dma.hbm_to_vmem [thread:$0]  %s98, 512, %s100, [#allocation12], 128, 128, 8
    $region37: #{tpu_custom_call.1} parent=1 // pred_fallthru
      _
    // Predicated region
    $region38: #{tpu_custom_call.1} parent=1 // pred_check
      _
    $region39: #{tpu_custom_call.1} parent=1 // pred_check_branch
      %107 = sbr.rel (0) target = $region41
    $region40: #{tpu_custom_call.1} parent=1 // pred_region
      _
    $region41: #{tpu_custom_call.1} parent=1 // pred_fallthru
      _
    // Predicated region
    $region42: #{tpu_custom_call.1} parent=1 // pred_check
      _
    $region43: #{tpu_custom_call.1} parent=1 // pred_check_branch
      %109 = sbr.rel (0) target = $region45
    $region44: #{tpu_custom_call.1} parent=1 // pred_region
      %111 = vsyncadd [#allocation12], 0
      %s112 = sshll.u32 %s10, 4
      %s113 = int_to_ptr.hbm [resolvable:$true] %s112
      %s114 = sshll.u32 [#allocation13], 4
      %s115 = int_to_ptr.vmem [resolvable:$true] %s114
      %120 = dma.hbm_to_vmem [thread:$0]  %s113, 512, %s115, [#allocation12], 128, 128, 8
    $region45: #{tpu_custom_call.1} parent=1 // pred_fallthru
      _
    // Predicated region
    $region46: #{tpu_custom_call.1} parent=1 // pred_check
      _
    $region47: #{tpu_custom_call.1} parent=1 // pred_check_branch
      %122 = sbr.rel (0) target = $region49
    $region48: #{tpu_custom_call.1} parent=1 // pred_region
      _
    $region49: #{tpu_custom_call.1} parent=1 // pred_fallthru
      _
    // Predicated region
    $region50: #{tpu_custom_call.1} parent=1 // pred_check
      _
    $region51: #{tpu_custom_call.1} parent=1 // pred_check_branch
      %124 = sbr.rel (0) target = $region53
    $region52: #{tpu_custom_call.1} parent=1 // pred_region
      %126 = dma.done [#allocation3], 256
    $region53: #{tpu_custom_call.1} parent=1 // pred_fallthru
      _
    // Predicated region
    $region54: #{tpu_custom_call.1} parent=1 // pred_check
      _
    $region55: #{tpu_custom_call.1} parent=1 // pred_check_branch
      %128 = sbr.rel (0) target = $region57
    $region56: #{tpu_custom_call.1} parent=1 // pred_region
      %130 = dma.done [#allocation6], 256
    $region57: #{tpu_custom_call.1} parent=1 // pred_fallthru
      _
    // Predicated region
    $region58: #{tpu_custom_call.1} parent=1 // pred_check
      _
    $region59: #{tpu_custom_call.1} parent=1 // pred_check_branch
      %132 = sbr.rel (0) target = $region61
    $region60: #{tpu_custom_call.1} parent=1 // pred_region
      %134 = dma.done [#allocation6], 256
    $region61: #{tpu_custom_call.1} parent=1 // pred_fallthru
      _
    // Predicated region
    $region62: #{tpu_custom_call.1} parent=1 // pred_check
      _
    $region63: #{tpu_custom_call.1} parent=1 // pred_check_branch
      %136 = sbr.rel (0) target = $region65
    $region64: #{tpu_custom_call.1} parent=1 // pred_region
      %138 = dma.done [#allocation9], 512
    $region65: #{tpu_custom_call.1} parent=1 // pred_fallthru
      _
    // Predicated region
    $region66: #{tpu_custom_call.1} parent=1 // pred_check
      _
    $region67: #{tpu_custom_call.1} parent=1 // pred_check_branch
      %140 = sbr.rel (0) target = $region69
    $region68: #{tpu_custom_call.1} parent=1 // pred_region
      %142 = dma.done [#allocation9], 512
    $region69: #{tpu_custom_call.1} parent=1 // pred_fallthru
      _
    // Predicated region
    $region70: #{tpu_custom_call.1} parent=1 // pred_check
      _
    $region71: #{tpu_custom_call.1} parent=1 // pred_check_branch
      %144 = sbr.rel (0) target = $region73
    $region72: #{tpu_custom_call.1} parent=1 // pred_region
      %146 = dma.done [#allocation12], 512
    $region73: #{tpu_custom_call.1} parent=1 // pred_fallthru
      _
    // Predicated region
    $region74: #{tpu_custom_call.1} parent=1 // pred_check
      _
    $region75: #{tpu_custom_call.1} parent=1 // pred_check_branch
      %148 = sbr.rel (0) target = $region77
    $region76: #{tpu_custom_call.1} parent=1 // pred_region
      %150 = dma.done [#allocation12], 512
    $region77: #{tpu_custom_call.1} parent=1 // pred_fallthru
      _
    %v151 = vld [vmem:[#allocation2] sm:$0xff]
    %v152 = vld [vmem:[#allocation2 + $0x8] sm:$0xff]
    %v153 = vld [vmem:[#allocation8] sm:$0xff]
    %v154 = vld [vmem:[#allocation8 + $0x8] sm:$0xff]
    %v155 = vld [vmem:[#allocation8 + $0x10] sm:$0xff]
    %v156 = vld [vmem:[#allocation8 + $0x18] sm:$0xff]
    %v157 = vld [vmem:[%s5] sm:$0x1]
    %v159 = vperm.slane %v157, 0
    %vm161 = vcmask 261120
    %v163 = vsel %vm161, %v151, 0
    %v166 = vsel %vm161, %v152, 0
    %168 = vmatpush.msra.mxu0 0.0
    %169 = vmatpush.msra.mxu0 0.0
    %170 = vmatpush.msra.mxu0 0.0
    %171 = vmatpush.msra.mxu0 0.0
    %172 = vmatpush.msra.mxu0 0.0
    %173 = vmatpush.msra.mxu0 0.0
    %174 = vmatpush.msra.mxu0 0.0
    %175 = vmatpush.msra.mxu0 0.0
    %176 = vmatpush.msra.mxu0 0.0
    %177 = vmatpush.msra.mxu0 0.0
    %178 = vmatpush.msra.mxu0 0.0
    %179 = vmatpush.msra.mxu0 0.0
    %180 = vmatpush.msra.mxu0 %v156
    %181 = vmatpush.msra.mxu0 %v155
    %182 = vmatpush.msra.mxu0 %v154
    %183 = vmatpush.msra.mxu0 %v153
    %184 = vmatmul.f32.gmra.mxu0 %v163
    %v185 = vpop.f32.mrf.mxu0
    %v186 = vadd.f32 %v159, %v185
    %187 = vmatmul.f32.gmra.mxu0 %v166
    %v188 = vpop.f32.mrf.mxu0
    %v189 = vadd.f32 %v159, %v188
    %190 = vdwg.mxu0
    %v191 = vld [vmem:[#allocation5] sm:$0xff]
    %v192 = vld [vmem:[#allocation5 + $0x8] sm:$0xff]
    %v193 = vld [vmem:[#allocation10] sm:$0xff]
    %v194 = vld [vmem:[#allocation10 + $0x8] sm:$0xff]
    %v195 = vld [vmem:[#allocation10 + $0x10] sm:$0xff]
    %v196 = vld [vmem:[#allocation10 + $0x18] sm:$0xff]
    %v197 = vld [vmem:[%s7] sm:$0x1]
    %v199 = vperm.slane %v197, 0
    %v202 = vsel %vm161, %v191, 0
    %v205 = vsel %vm161, %v192, 0
    %207 = vmatpush.msra.mxu0 0.0
    %208 = vmatpush.msra.mxu0 0.0
    %209 = vmatpush.msra.mxu0 0.0
    %210 = vmatpush.msra.mxu0 0.0
    %211 = vmatpush.msra.mxu0 0.0
    %212 = vmatpush.msra.mxu0 0.0
    %213 = vmatpush.msra.mxu0 0.0
    %214 = vmatpush.msra.mxu0 0.0
    %215 = vmatpush.msra.mxu0 0.0
    %216 = vmatpush.msra.mxu0 0.0
    %217 = vmatpush.msra.mxu0 0.0
    %218 = vmatpush.msra.mxu0 0.0
    %219 = vmatpush.msra.mxu0 %v196
    %220 = vmatpush.msra.mxu0 %v195
    %221 = vmatpush.msra.mxu0 %v194
    %222 = vmatpush.msra.mxu0 %v193
    %223 = vmatmul.f32.gmra.mxu0 %v202
    %v224 = vpop.f32.mrf.mxu0
    %v225 = vadd.f32 %v199, %v224
    %226 = vmatmul.f32.gmra.mxu0 %v205
    %v227 = vpop.f32.mrf.mxu0
    %v228 = vadd.f32 %v199, %v227
    %229 = vdwg.mxu0
    %v230 = vld [vmem:[#allocation7] sm:$0xff]
    %v231 = vld [vmem:[#allocation7 + $0x8] sm:$0xff]
    %v232 = vld [vmem:[#allocation11] sm:$0xff]
    %v233 = vld [vmem:[#allocation11 + $0x8] sm:$0xff]
    %v234 = vld [vmem:[#allocation11 + $0x10] sm:$0xff]
    %v235 = vld [vmem:[#allocation11 + $0x18] sm:$0xff]
    %v236 = vld [vmem:[%s9] sm:$0x1]
    %v238 = vperm.slane %v236, 0
    %v241 = vsel %vm161, %v230, 0
    %v244 = vsel %vm161, %v231, 0
    %246 = vmatpush.msra.mxu0 0.0
    %247 = vmatpush.msra.mxu0 0.0
    %248 = vmatpush.msra.mxu0 0.0
    %249 = vmatpush.msra.mxu0 0.0
    %250 = vmatpush.msra.mxu0 0.0
    %251 = vmatpush.msra.mxu0 0.0
    %252 = vmatpush.msra.mxu0 0.0
    %253 = vmatpush.msra.mxu0 0.0
    %254 = vmatpush.msra.mxu0 0.0
    %255 = vmatpush.msra.mxu0 0.0
    %256 = vmatpush.msra.mxu0 0.0
    %257 = vmatpush.msra.mxu0 0.0
    %258 = vmatpush.msra.mxu0 %v235
    %259 = vmatpush.msra.mxu0 %v234
    %260 = vmatpush.msra.mxu0 %v233
    %261 = vmatpush.msra.mxu0 %v232
    %262 = vmatmul.f32.gmra.mxu0 %v241
    %v263 = vpop.f32.mrf.mxu0
    %v264 = vadd.f32 %v238, %v263
    %265 = vmatmul.f32.gmra.mxu0 %v244
    %v266 = vpop.f32.mrf.mxu0
    %v267 = vadd.f32 %v238, %v266
    %268 = vdwg.mxu0
    %v269 = vmul.f32 %v186, 0.35355338
    %v270 = vmul.f32 %v189, 0.35355338
    %273 = vrot.lane.b32.xlu0 %v269, 120
    %v274 = vpop.permute.xlu0 %273
    %275 = vrot.lane.b32.xlu0 %v270, 120
    %v276 = vpop.permute.xlu0 %275
    %279 = vrot.lane.b32.xlu0 %v269, 112
    %v280 = vpop.permute.xlu0 %279
    %281 = vrot.lane.b32.xlu0 %v270, 112
    %v282 = vpop.permute.xlu0 %281
    %285 = vrot.lane.b32.xlu0 %v269, 104
    %v286 = vpop.permute.xlu0 %285
    %287 = vrot.lane.b32.xlu0 %v270, 104
    %v288 = vpop.permute.xlu0 %287
    %v291 = vrot.slane %v280, 4
    %vm292 = vcmask 1047556
    %v293 = vsel %vm292, %v291, %v269
    %v294 = vrot.slane %v269, 4
    %v295 = vsel %vm292, %v280, %v294
    %v297 = vunpack.c.l.s4 1983009808
    %v298 = vunpack.c.0.s8 %v297
    %v299 = vperm.slane %v293, %v298
    %v301 = vunpack.c.l.s4 1983009808
    %v302 = vunpack.c.0.s8 %v301
    %v303 = vperm.slane %v295, %v302
    %v304 = vrot.slane %v286, 4
    %v305 = vsel %vm292, %v304, %v274
    %v306 = vrot.slane %v274, 4
    %v307 = vsel %vm292, %v286, %v306
    %v309 = vunpack.c.l.s4 1983009808
    %v310 = vunpack.c.0.s8 %v309
    %v311 = vperm.slane %v305, %v310
    %v313 = vunpack.c.l.s4 1983009808
    %v314 = vunpack.c.0.s8 %v313
    %v315 = vperm.slane %v307, %v314
    %v316 = vrot.slane %v311, 4
    %v317 = vsel %vm292, %v316, %v299
    %v318 = vrot.slane %v299, 4
    %v319 = vsel %vm292, %v311, %v318
    %v321 = vunpack.c.l.s4 1934713408
    %v322 = vunpack.c.0.s8 %v321
    %v323 = vperm.slane %v317, %v322
    %v325 = vunpack.c.l.s4 1934713408
    %v326 = vunpack.c.0.s8 %v325
    %v327 = vperm.slane %v319, %v326
    %v328 = vrot.slane %v315, 4
    %v329 = vsel %vm292, %v328, %v303
    %v330 = vrot.slane %v303, 4
    %v331 = vsel %vm292, %v315, %v330
    %v333 = vunpack.c.l.s4 1934713408
    %v334 = vunpack.c.0.s8 %v333
    %v335 = vperm.slane %v329, %v334
    %v337 = vunpack.c.l.s4 1934713408
    %v338 = vunpack.c.0.s8 %v337
    %v339 = vperm.slane %v331, %v338
    %v340 = vrot.slane %v323, 4
    %v341 = vsel %vm292, 0.0, %v340
    %v342 = vrot.slane %v327, 4
    %v343 = vsel %vm292, 0.0, %v342
    %v344 = vrot.slane %v335, 4
    %v345 = vsel %vm292, 0.0, %v344
    %v346 = vrot.slane %v339, 4
    %v347 = vsel %vm292, 0.0, %v346
    %v348 = vrot.slane %v282, 4
    %v349 = vsel %vm292, %v348, %v270
    %v350 = vrot.slane %v270, 4
    %v351 = vsel %vm292, %v282, %v350
    %v353 = vunpack.c.l.s4 1983009808
    %v354 = vunpack.c.0.s8 %v353
    %v355 = vperm.slane %v349, %v354
    %v357 = vunpack.c.l.s4 1983009808
    %v358 = vunpack.c.0.s8 %v357
    %v359 = vperm.slane %v351, %v358
    %v360 = vrot.slane %v288, 4
    %v361 = vsel %vm292, %v360, %v276
    %v362 = vrot.slane %v276, 4
    %v363 = vsel %vm292, %v288, %v362
    %v365 = vunpack.c.l.s4 1983009808
    %v366 = vunpack.c.0.s8 %v365
    %v367 = vperm.slane %v361, %v366
    %v369 = vunpack.c.l.s4 1983009808
    %v370 = vunpack.c.0.s8 %v369
    %v371 = vperm.slane %v363, %v370
    %v372 = vrot.slane %v367, 4
    %v373 = vsel %vm292, %v372, %v355
    %v374 = vrot.slane %v355, 4
    %v375 = vsel %vm292, %v367, %v374
    %v377 = vunpack.c.l.s4 1934713408
    %v378 = vunpack.c.0.s8 %v377
    %v379 = vperm.slane %v373, %v378
    %v381 = vunpack.c.l.s4 1934713408
    %v382 = vunpack.c.0.s8 %v381
    %v383 = vperm.slane %v375, %v382
    %v384 = vrot.slane %v371, 4
    %v385 = vsel %vm292, %v384, %v359
    %v386 = vrot.slane %v359, 4
    %v387 = vsel %vm292, %v371, %v386
    %v389 = vunpack.c.l.s4 1934713408
    %v390 = vunpack.c.0.s8 %v389
    %v391 = vperm.slane %v385, %v390
    %v393 = vunpack.c.l.s4 1934713408
    %v394 = vunpack.c.0.s8 %v393
    %v395 = vperm.slane %v387, %v394
    %v396 = vrot.slane %v379, 4
    %v397 = vsel %vm292, 0.0, %v396
    %v398 = vrot.slane %v383, 4
    %v399 = vsel %vm292, 0.0, %v398
    %v400 = vrot.slane %v391, 4
    %v401 = vsel %vm292, 0.0, %v400
    %v402 = vrot.slane %v395, 4
    %v403 = vsel %vm292, 0.0, %v402
    %v404 = vsel %vm292, %v342, %v323
    %v406 = vunpack.c.l.s4 1983009808
    %v407 = vunpack.c.0.s8 %v406
    %v408 = vperm.slane %v404, %v407
    %v409 = vrot.slane %v343, 4
    %v410 = vsel %vm292, %v409, %v341
    %v412 = vunpack.c.l.s4 1983009808
    %v413 = vunpack.c.0.s8 %v412
    %v414 = vperm.slane %v410, %v413
    %v415 = vsel %vm292, %v346, %v335
    %v417 = vunpack.c.l.s4 1983009808
    %v418 = vunpack.c.0.s8 %v417
    %v419 = vperm.slane %v415, %v418
    %v420 = vrot.slane %v347, 4
    %v421 = vsel %vm292, %v420, %v345
    %v423 = vunpack.c.l.s4 1983009808
    %v424 = vunpack.c.0.s8 %v423
    %v425 = vperm.slane %v421, %v424
    %v426 = vrot.slane %v414, 4
    %v427 = vsel %vm292, %v426, %v408
    %v428 = vrot.slane %v408, 4
    %v429 = vsel %vm292, %v414, %v428
    %v431 = vunpack.c.l.s4 1934713408
    %v432 = vunpack.c.0.s8 %v431
    %v433 = vperm.slane %v427, %v432
    %v435 = vunpack.c.l.s4 1934713408
    %v436 = vunpack.c.0.s8 %v435
    %v437 = vperm.slane %v429, %v436
    %v438 = vrot.slane %v425, 4
    %v439 = vsel %vm292, %v438, %v419
    %v440 = vrot.slane %v419, 4
    %v441 = vsel %vm292, %v425, %v440
    %v443 = vunpack.c.l.s4 1934713408
    %v444 = vunpack.c.0.s8 %v443
    %v445 = vperm.slane %v439, %v444
    %v447 = vunpack.c.l.s4 1934713408
    %v448 = vunpack.c.0.s8 %v447
    %v449 = vperm.slane %v441, %v448
    %v450 = vrot.slane %v445, 4
    %v451 = vsel %vm292, %v450, %v433
    %v452 = vrot.slane %v433, 4
    %v453 = vsel %vm292, %v445, %v452
    %v454 = vrot.slane %v449, 4
    %v455 = vsel %vm292, %v454, %v437
    %v456 = vrot.slane %v437, 4
    %v457 = vsel %vm292, %v449, %v456
    %v458 = vsel %vm292, %v398, %v379
    %v460 = vunpack.c.l.s4 1983009808
    %v461 = vunpack.c.0.s8 %v460
    %v462 = vperm.slane %v458, %v461
    %v463 = vrot.slane %v399, 4
    %v464 = vsel %vm292, %v463, %v397
    %v466 = vunpack.c.l.s4 1983009808
    %v467 = vunpack.c.0.s8 %v466
    %v468 = vperm.slane %v464, %v467
    %v469 = vsel %vm292, %v402, %v391
    %v471 = vunpack.c.l.s4 1983009808
    %v472 = vunpack.c.0.s8 %v471
    %v473 = vperm.slane %v469, %v472
    %v474 = vrot.slane %v403, 4
    %v475 = vsel %vm292, %v474, %v401
    %v477 = vunpack.c.l.s4 1983009808
    %v478 = vunpack.c.0.s8 %v477
    %v479 = vperm.slane %v475, %v478
    %v480 = vrot.slane %v468, 4
    %v481 = vsel %vm292, %v480, %v462
    %v482 = vrot.slane %v462, 4
    %v483 = vsel %vm292, %v468, %v482
    %v485 = vunpack.c.l.s4 1934713408
    %v486 = vunpack.c.0.s8 %v485
    %v487 = vperm.slane %v481, %v486
    %v489 = vunpack.c.l.s4 1934713408
    %v490 = vunpack.c.0.s8 %v489
    %v491 = vperm.slane %v483, %v490
    %v492 = vrot.slane %v479, 4
    %v493 = vsel %vm292, %v492, %v473
    %v494 = vrot.slane %v473, 4
    %v495 = vsel %vm292, %v479, %v494
    %v497 = vunpack.c.l.s4 1934713408
    %v498 = vunpack.c.0.s8 %v497
    %v499 = vperm.slane %v493, %v498
    %v501 = vunpack.c.l.s4 1934713408
    %v502 = vunpack.c.0.s8 %v501
    %v503 = vperm.slane %v495, %v502
    %v504 = vrot.slane %v499, 4
    %v505 = vsel %vm292, %v504, %v487
    %v506 = vrot.slane %v487, 4
    %v507 = vsel %vm292, %v499, %v506
    %v508 = vrot.slane %v503, 4
    %v509 = vsel %vm292, %v508, %v491
    %v510 = vrot.slane %v491, 4
    %v511 = vsel %vm292, %v503, %v510
    %514 = vrot.lane.b32.xlu0 %v225, 120
    %v515 = vpop.permute.xlu0 %514
    %516 = vrot.lane.b32.xlu0 %v228, 120
    %v517 = vpop.permute.xlu0 %516
    %520 = vrot.lane.b32.xlu0 %v225, 112
    %v521 = vpop.permute.xlu0 %520
    %522 = vrot.lane.b32.xlu0 %v228, 112
    %v523 = vpop.permute.xlu0 %522
    %526 = vrot.lane.b32.xlu0 %v225, 104
    %v527 = vpop.permute.xlu0 %526
    %528 = vrot.lane.b32.xlu0 %v228, 104
    %v529 = vpop.permute.xlu0 %528
    %v532 = vrot.slane %v521, 4
    %v533 = vsel %vm292, %v532, %v225
    %v534 = vrot.slane %v225, 4
    %v535 = vsel %vm292, %v521, %v534
    %v537 = vunpack.c.l.s4 1983009808
    %v538 = vunpack.c.0.s8 %v537
    %v539 = vperm.slane %v533, %v538
    %v541 = vunpack.c.l.s4 1983009808
    %v542 = vunpack.c.0.s8 %v541
    %v543 = vperm.slane %v535, %v542
    %v544 = vrot.slane %v527, 4
    %v545 = vsel %vm292, %v544, %v515
    %v546 = vrot.slane %v515, 4
    %v547 = vsel %vm292, %v527, %v546
    %v549 = vunpack.c.l.s4 1983009808
    %v550 = vunpack.c.0.s8 %v549
    %v551 = vperm.slane %v545, %v550
    %v553 = vunpack.c.l.s4 1983009808
    %v554 = vunpack.c.0.s8 %v553
    %v555 = vperm.slane %v547, %v554
    %v556 = vrot.slane %v551, 4
    %v557 = vsel %vm292, %v556, %v539
    %v558 = vrot.slane %v539, 4
    %v559 = vsel %vm292, %v551, %v558
    %v561 = vunpack.c.l.s4 1934713408
    %v562 = vunpack.c.0.s8 %v561
    %v563 = vperm.slane %v557, %v562
    %v565 = vunpack.c.l.s4 1934713408
    %v566 = vunpack.c.0.s8 %v565
    %v567 = vperm.slane %v559, %v566
    %v568 = vrot.slane %v555, 4
    %v569 = vsel %vm292, %v568, %v543
    %v570 = vrot.slane %v543, 4
    %v571 = vsel %vm292, %v555, %v570
    %v573 = vunpack.c.l.s4 1934713408
    %v574 = vunpack.c.0.s8 %v573
    %v575 = vperm.slane %v569, %v574
    %v577 = vunpack.c.l.s4 1934713408
    %v578 = vunpack.c.0.s8 %v577
    %v579 = vperm.slane %v571, %v578
    %v580 = vrot.slane %v563, 4
    %v581 = vsel %vm292, 0.0, %v580
    %v582 = vrot.slane %v567, 4
    %v583 = vsel %vm292, 0.0, %v582
    %v584 = vrot.slane %v575, 4
    %v585 = vsel %vm292, 0.0, %v584
    %v586 = vrot.slane %v579, 4
    %v587 = vsel %vm292, 0.0, %v586
    %v588 = vrot.slane %v523, 4
    %v589 = vsel %vm292, %v588, %v228
    %v590 = vrot.slane %v228, 4
    %v591 = vsel %vm292, %v523, %v590
    %v593 = vunpack.c.l.s4 1983009808
    %v594 = vunpack.c.0.s8 %v593
    %v595 = vperm.slane %v589, %v594
    %v597 = vunpack.c.l.s4 1983009808
    %v598 = vunpack.c.0.s8 %v597
    %v599 = vperm.slane %v591, %v598
    %v600 = vrot.slane %v529, 4
    %v601 = vsel %vm292, %v600, %v517
    %v602 = vrot.slane %v517, 4
    %v603 = vsel %vm292, %v529, %v602
    %v605 = vunpack.c.l.s4 1983009808
    %v606 = vunpack.c.0.s8 %v605
    %v607 = vperm.slane %v601, %v606
    %v609 = vunpack.c.l.s4 1983009808
    %v610 = vunpack.c.0.s8 %v609
    %v611 = vperm.slane %v603, %v610
    %v612 = vrot.slane %v607, 4
    %v613 = vsel %vm292, %v612, %v595
    %v614 = vrot.slane %v595, 4
    %v615 = vsel %vm292, %v607, %v614
    %v617 = vunpack.c.l.s4 1934713408
    %v618 = vunpack.c.0.s8 %v617
    %v619 = vperm.slane %v613, %v618
    %v621 = vunpack.c.l.s4 1934713408
    %v622 = vunpack.c.0.s8 %v621
    %v623 = vperm.slane %v615, %v622
    %v624 = vrot.slane %v611, 4
    %v625 = vsel %vm292, %v624, %v599
    %v626 = vrot.slane %v599, 4
    %v627 = vsel %vm292, %v611, %v626
    %v629 = vunpack.c.l.s4 1934713408
    %v630 = vunpack.c.0.s8 %v629
    %v631 = vperm.slane %v625, %v630
    %v633 = vunpack.c.l.s4 1934713408
    %v634 = vunpack.c.0.s8 %v633
    %v635 = vperm.slane %v627, %v634
    %v636 = vrot.slane %v619, 4
    %v637 = vsel %vm292, 0.0, %v636
    %v638 = vrot.slane %v623, 4
    %v639 = vsel %vm292, 0.0, %v638
    %v640 = vrot.slane %v631, 4
    %v641 = vsel %vm292, 0.0, %v640
    %v642 = vrot.slane %v635, 4
    %v643 = vsel %vm292, 0.0, %v642
    %v644 = vsel %vm292, %v582, %v563
    %v646 = vunpack.c.l.s4 1983009808
    %v647 = vunpack.c.0.s8 %v646
    %v648 = vperm.slane %v644, %v647
    %v649 = vrot.slane %v583, 4
    %v650 = vsel %vm292, %v649, %v581
    %v652 = vunpack.c.l.s4 1983009808
    %v653 = vunpack.c.0.s8 %v652
    %v654 = vperm.slane %v650, %v653
    %v655 = vsel %vm292, %v586, %v575
    %v657 = vunpack.c.l.s4 1983009808
    %v658 = vunpack.c.0.s8 %v657
    %v659 = vperm.slane %v655, %v658
    %v660 = vrot.slane %v587, 4
    %v661 = vsel %vm292, %v660, %v585
    %v663 = vunpack.c.l.s4 1983009808
    %v664 = vunpack.c.0.s8 %v663
    %v665 = vperm.slane %v661, %v664
    %v666 = vrot.slane %v654, 4
    %v667 = vsel %vm292, %v666, %v648
    %v668 = vrot.slane %v648, 4
    %v669 = vsel %vm292, %v654, %v668
    %v671 = vunpack.c.l.s4 1934713408
    %v672 = vunpack.c.0.s8 %v671
    %v673 = vperm.slane %v667, %v672
    %v675 = vunpack.c.l.s4 1934713408
    %v676 = vunpack.c.0.s8 %v675
    %v677 = vperm.slane %v669, %v676
    %v678 = vrot.slane %v665, 4
    %v679 = vsel %vm292, %v678, %v659
    %v680 = vrot.slane %v659, 4
    %v681 = vsel %vm292, %v665, %v680
    %v683 = vunpack.c.l.s4 1934713408
    %v684 = vunpack.c.0.s8 %v683
    %v685 = vperm.slane %v679, %v684
    %v687 = vunpack.c.l.s4 1934713408
    %v688 = vunpack.c.0.s8 %v687
    %v689 = vperm.slane %v681, %v688
    %v690 = vrot.slane %v685, 4
    %v691 = vsel %vm292, %v690, %v673
    %v692 = vrot.slane %v673, 4
    %v693 = vsel %vm292, %v685, %v692
    %v694 = vrot.slane %v689, 4
    %v695 = vsel %vm292, %v694, %v677
    %v696 = vrot.slane %v677, 4
    %v697 = vsel %vm292, %v689, %v696
    %v698 = vsel %vm292, %v638, %v619
    %v700 = vunpack.c.l.s4 1983009808
    %v701 = vunpack.c.0.s8 %v700
    %v702 = vperm.slane %v698, %v701
    %v703 = vrot.slane %v639, 4
    %v704 = vsel %vm292, %v703, %v637
    %v706 = vunpack.c.l.s4 1983009808
    %v707 = vunpack.c.0.s8 %v706
    %v708 = vperm.slane %v704, %v707
    %v709 = vsel %vm292, %v642, %v631
    %v711 = vunpack.c.l.s4 1983009808
    %v712 = vunpack.c.0.s8 %v711
    %v713 = vperm.slane %v709, %v712
    %v714 = vrot.slane %v643, 4
    %v715 = vsel %vm292, %v714, %v641
    %v717 = vunpack.c.l.s4 1983009808
    %v718 = vunpack.c.0.s8 %v717
    %v719 = vperm.slane %v715, %v718
    %v720 = vrot.slane %v708, 4
    %v721 = vsel %vm292, %v720, %v702
    %v722 = vrot.slane %v702, 4
    %v723 = vsel %vm292, %v708, %v722
    %v725 = vunpack.c.l.s4 1934713408
    %v726 = vunpack.c.0.s8 %v725
    %v727 = vperm.slane %v721, %v726
    %v729 = vunpack.c.l.s4 1934713408
    %v730 = vunpack.c.0.s8 %v729
    %v731 = vperm.slane %v723, %v730
    %v732 = vrot.slane %v719, 4
    %v733 = vsel %vm292, %v732, %v713
    %v734 = vrot.slane %v713, 4
    %v735 = vsel %vm292, %v719, %v734
    %v737 = vunpack.c.l.s4 1934713408
    %v738 = vunpack.c.0.s8 %v737
    %v739 = vperm.slane %v733, %v738
    %v741 = vunpack.c.l.s4 1934713408
    %v742 = vunpack.c.0.s8 %v741
    %v743 = vperm.slane %v735, %v742
    %v744 = vrot.slane %v739, 4
    %v745 = vsel %vm292, %v744, %v727
    %v746 = vrot.slane %v727, 4
    %v747 = vsel %vm292, %v739, %v746
    %v748 = vrot.slane %v743, 4
    %v749 = vsel %vm292, %v748, %v731
    %v750 = vrot.slane %v731, 4
    %v751 = vsel %vm292, %v743, %v750
    %754 = vrot.lane.b32.xlu0 %v264, 120
    %v755 = vpop.permute.xlu0 %754
    %756 = vrot.lane.b32.xlu0 %v267, 120
    %v757 = vpop.permute.xlu0 %756
    %760 = vrot.lane.b32.xlu0 %v264, 112
    %v761 = vpop.permute.xlu0 %760
    %762 = vrot.lane.b32.xlu0 %v267, 112
    %v763 = vpop.permute.xlu0 %762
    %766 = vrot.lane.b32.xlu0 %v264, 104
    %v767 = vpop.permute.xlu0 %766
    %768 = vrot.lane.b32.xlu0 %v267, 104
    %v769 = vpop.permute.xlu0 %768
    %v772 = vrot.slane %v761, 4
    %v773 = vsel %vm292, %v772, %v264
    %v774 = vrot.slane %v264, 4
    %v775 = vsel %vm292, %v761, %v774
    %v777 = vunpack.c.l.s4 1983009808
    %v778 = vunpack.c.0.s8 %v777
    %v779 = vperm.slane %v773, %v778
    %v781 = vunpack.c.l.s4 1983009808
    %v782 = vunpack.c.0.s8 %v781
    %v783 = vperm.slane %v775, %v782
    %v784 = vrot.slane %v767, 4
    %v785 = vsel %vm292, %v784, %v755
    %v786 = vrot.slane %v755, 4
    %v787 = vsel %vm292, %v767, %v786
    %v789 = vunpack.c.l.s4 1983009808
    %v790 = vunpack.c.0.s8 %v789
    %v791 = vperm.slane %v785, %v790
    %v793 = vunpack.c.l.s4 1983009808
    %v794 = vunpack.c.0.s8 %v793
    %v795 = vperm.slane %v787, %v794
    %v796 = vrot.slane %v791, 4
    %v797 = vsel %vm292, %v796, %v779
    %v798 = vrot.slane %v779, 4
    %v799 = vsel %vm292, %v791, %v798
    %v801 = vunpack.c.l.s4 1934713408
    %v802 = vunpack.c.0.s8 %v801
    %v803 = vperm.slane %v797, %v802
    %v805 = vunpack.c.l.s4 1934713408
    %v806 = vunpack.c.0.s8 %v805
    %v807 = vperm.slane %v799, %v806
    %v808 = vrot.slane %v795, 4
    %v809 = vsel %vm292, %v808, %v783
    %v810 = vrot.slane %v783, 4
    %v811 = vsel %vm292, %v795, %v810
    %v813 = vunpack.c.l.s4 1934713408
    %v814 = vunpack.c.0.s8 %v813
    %v815 = vperm.slane %v809, %v814
    %v817 = vunpack.c.l.s4 1934713408
    %v818 = vunpack.c.0.s8 %v817
    %v819 = vperm.slane %v811, %v818
    %v820 = vrot.slane %v803, 4
    %v821 = vsel %vm292, 0.0, %v820
    %v822 = vrot.slane %v807, 4
    %v823 = vsel %vm292, 0.0, %v822
    %v824 = vrot.slane %v815, 4
    %v825 = vsel %vm292, 0.0, %v824
    %v826 = vrot.slane %v819, 4
    %v827 = vsel %vm292, 0.0, %v826
    %v828 = vrot.slane %v763, 4
    %v829 = vsel %vm292, %v828, %v267
    %v830 = vrot.slane %v267, 4
    %v831 = vsel %vm292, %v763, %v830
    %v833 = vunpack.c.l.s4 1983009808
    %v834 = vunpack.c.0.s8 %v833
    %v835 = vperm.slane %v829, %v834
    %v837 = vunpack.c.l.s4 1983009808
    %v838 = vunpack.c.0.s8 %v837
    %v839 = vperm.slane %v831, %v838
    %v840 = vrot.slane %v769, 4
    %v841 = vsel %vm292, %v840, %v757
    %v842 = vrot.slane %v757, 4
    %v843 = vsel %vm292, %v769, %v842
    %v845 = vunpack.c.l.s4 1983009808
    %v846 = vunpack.c.0.s8 %v845
    %v847 = vperm.slane %v841, %v846
    %v849 = vunpack.c.l.s4 1983009808
    %v850 = vunpack.c.0.s8 %v849
    %v851 = vperm.slane %v843, %v850
    %v852 = vrot.slane %v847, 4
    %v853 = vsel %vm292, %v852, %v835
    %v854 = vrot.slane %v835, 4
    %v855 = vsel %vm292, %v847, %v854
    %v857 = vunpack.c.l.s4 1934713408
    %v858 = vunpack.c.0.s8 %v857
    %v859 = vperm.slane %v853, %v858
    %v861 = vunpack.c.l.s4 1934713408
    %v862 = vunpack.c.0.s8 %v861
    %v863 = vperm.slane %v855, %v862
    %v864 = vrot.slane %v851, 4
    %v865 = vsel %vm292, %v864, %v839
    %v866 = vrot.slane %v839, 4
    %v867 = vsel %vm292, %v851, %v866
    %v869 = vunpack.c.l.s4 1934713408
    %v870 = vunpack.c.0.s8 %v869
    %v871 = vperm.slane %v865, %v870
    %v873 = vunpack.c.l.s4 1934713408
    %v874 = vunpack.c.0.s8 %v873
    %v875 = vperm.slane %v867, %v874
    %v876 = vrot.slane %v859, 4
    %v877 = vsel %vm292, 0.0, %v876
    %v878 = vrot.slane %v863, 4
    %v879 = vsel %vm292, 0.0, %v878
    %v880 = vrot.slane %v871, 4
    %v881 = vsel %vm292, 0.0, %v880
    %v882 = vrot.slane %v875, 4
    %v883 = vsel %vm292, 0.0, %v882
    %v884 = vsel %vm292, %v822, %v803
    %v886 = vunpack.c.l.s4 1983009808
    %v887 = vunpack.c.0.s8 %v886
    %v888 = vperm.slane %v884, %v887
    %v889 = vrot.slane %v823, 4
    %v890 = vsel %vm292, %v889, %v821
    %v892 = vunpack.c.l.s4 1983009808
    %v893 = vunpack.c.0.s8 %v892
    %v894 = vperm.slane %v890, %v893
    %v895 = vsel %vm292, %v826, %v815
    %v897 = vunpack.c.l.s4 1983009808
    %v898 = vunpack.c.0.s8 %v897
    %v899 = vperm.slane %v895, %v898
    %v900 = vrot.slane %v827, 4
    %v901 = vsel %vm292, %v900, %v825
    %v903 = vunpack.c.l.s4 1983009808
    %v904 = vunpack.c.0.s8 %v903
    %v905 = vperm.slane %v901, %v904
    %v906 = vrot.slane %v894, 4
    %v907 = vsel %vm292, %v906, %v888
    %v908 = vrot.slane %v888, 4
    %v909 = vsel %vm292, %v894, %v908
    %v911 = vunpack.c.l.s4 1934713408
    %v912 = vunpack.c.0.s8 %v911
    %v913 = vperm.slane %v907, %v912
    %v915 = vunpack.c.l.s4 1934713408
    %v916 = vunpack.c.0.s8 %v915
    %v917 = vperm.slane %v909, %v916
    %v918 = vrot.slane %v905, 4
    %v919 = vsel %vm292, %v918, %v899
    %v920 = vrot.slane %v899, 4
    %v921 = vsel %vm292, %v905, %v920
    %v923 = vunpack.c.l.s4 1934713408
    %v924 = vunpack.c.0.s8 %v923
    %v925 = vperm.slane %v919, %v924
    %v927 = vunpack.c.l.s4 1934713408
    %v928 = vunpack.c.0.s8 %v927
    %v929 = vperm.slane %v921, %v928
    %v930 = vrot.slane %v925, 4
    %v931 = vsel %vm292, %v930, %v913
    %v932 = vrot.slane %v913, 4
    %v933 = vsel %vm292, %v925, %v932
    %v934 = vrot.slane %v929, 4
    %v935 = vsel %vm292, %v934, %v917
    %v936 = vrot.slane %v917, 4
    %v937 = vsel %vm292, %v929, %v936
    %v938 = vsel %vm292, %v878, %v859
    %v940 = vunpack.c.l.s4 1983009808
    %v941 = vunpack.c.0.s8 %v940
    %v942 = vperm.slane %v938, %v941
    %v943 = vrot.slane %v879, 4
    %v944 = vsel %vm292, %v943, %v877
    %v946 = vunpack.c.l.s4 1983009808
    %v947 = vunpack.c.0.s8 %v946
    %v948 = vperm.slane %v944, %v947
    %v949 = vsel %vm292, %v882, %v871
    %v951 = vunpack.c.l.s4 1983009808
    %v952 = vunpack.c.0.s8 %v951
    %v953 = vperm.slane %v949, %v952
    %v954 = vrot.slane %v883, 4
    %v955 = vsel %vm292, %v954, %v881
    %v957 = vunpack.c.l.s4 1983009808
    %v958 = vunpack.c.0.s8 %v957
    %v959 = vperm.slane %v955, %v958
    %v960 = vrot.slane %v948, 4
    %v961 = vsel %vm292, %v960, %v942
    %v962 = vrot.slane %v942, 4
    %v963 = vsel %vm292, %v948, %v962
    %v965 = vunpack.c.l.s4 1934713408
    %v966 = vunpack.c.0.s8 %v965
    %v967 = vperm.slane %v961, %v966
    %v969 = vunpack.c.l.s4 1934713408
    %v970 = vunpack.c.0.s8 %v969
    %v971 = vperm.slane %v963, %v970
    %v972 = vrot.slane %v959, 4
    %v973 = vsel %vm292, %v972, %v953
    %v974 = vrot.slane %v953, 4
    %v975 = vsel %vm292, %v959, %v974
    %v977 = vunpack.c.l.s4 1934713408
    %v978 = vunpack.c.0.s8 %v977
    %v979 = vperm.slane %v973, %v978
    %v981 = vunpack.c.l.s4 1934713408
    %v982 = vunpack.c.0.s8 %v981
    %v983 = vperm.slane %v975, %v982
    %v984 = vrot.slane %v979, 4
    %v985 = vsel %vm292, %v984, %v967
    %v986 = vrot.slane %v967, 4
    %v987 = vsel %vm292, %v979, %v986
    %v988 = vrot.slane %v983, 4
    %v989 = vsel %vm292, %v988, %v971
    %v990 = vrot.slane %v971, 4
    %v991 = vsel %vm292, %v983, %v990
    %v992 = vld [vmem:[%s3] sm:$0x1]
    %v993 = vld [vmem:[%s3 + $0x1] sm:$0x1]
    %vm994 = vcmp.gt.f32.partialorder %v992, 0.5
    %vm995 = vcmp.gt.f32.partialorder %v993, 0.5
    %v996 = vsel %vm994, -1e+09, 0.0
    %v997 = vsel %vm995, -1e+09, 0.0
    %v1000 = vperm.slane %v996, 0
    %v1001 = vperm.slane %v997, 0
    %vm1004 = vcmask 64512
    %v1006 = vsel %vm1004, %v451, 0
    %v1009 = vsel %vm1004, %v691, 0
    %1011 = vmatpush.xpose.msra.mxu0 0.0
    %1012 = vmatpush.xpose.msra.mxu0 0.0
    %1013 = vmatpush.xpose.msra.mxu0 0.0
    %1014 = vmatpush.xpose.msra.mxu0 0.0
    %1015 = vmatpush.xpose.msra.mxu0 0.0
    %1016 = vmatpush.xpose.msra.mxu0 0.0
    %1017 = vmatpush.xpose.msra.mxu0 0.0
    %1018 = vmatpush.xpose.msra.mxu0 0.0
    %1019 = vmatpush.xpose.msra.mxu0 0.0
    %1020 = vmatpush.xpose.msra.mxu0 0.0
    %1021 = vmatpush.xpose.msra.mxu0 0.0
    %1022 = vmatpush.xpose.msra.mxu0 0.0
    %1023 = vmatpush.xpose.msra.mxu0 0.0
    %1024 = vmatpush.xpose.msra.mxu0 0.0
    %1025 = vmatpush.xpose.msra.mxu0 0.0
    %1026 = vmatpush.xpose.msra.mxu0 %v1009
    %1027 = vmatmul.f32.gmra.mxu0 %v1006
    %v1028 = vpop.f32.mrf.mxu0
    %v1029 = vadd.f32 %v1000, %v1028
    %1030 = vdwg.mxu0
    %v1032 = vsel %vm1004, %v453, 0
    %v1035 = vsel %vm1004, %v693, 0
    %1037 = vmatpush.xpose.msra.mxu0 0.0
    %1038 = vmatpush.xpose.msra.mxu0 0.0
    %1039 = vmatpush.xpose.msra.mxu0 0.0
    %1040 = vmatpush.xpose.msra.mxu0 0.0
    %1041 = vmatpush.xpose.msra.mxu0 0.0
    %1042 = vmatpush.xpose.msra.mxu0 0.0
    %1043 = vmatpush.xpose.msra.mxu0 0.0
    %1044 = vmatpush.xpose.msra.mxu0 0.0
    %1045 = vmatpush.xpose.msra.mxu0 0.0
    %1046 = vmatpush.xpose.msra.mxu0 0.0
    %1047 = vmatpush.xpose.msra.mxu0 0.0
    %1048 = vmatpush.xpose.msra.mxu0 0.0
    %1049 = vmatpush.xpose.msra.mxu0 0.0
    %1050 = vmatpush.xpose.msra.mxu0 0.0
    %1051 = vmatpush.xpose.msra.mxu0 0.0
    %1052 = vmatpush.xpose.msra.mxu0 %v1035
    %1053 = vmatmul.f32.gmra.mxu0 %v1032
    %v1054 = vpop.f32.mrf.mxu0
    %v1055 = vadd.f32 %v1000, %v1054
    %1056 = vdwg.mxu0
    %v1058 = vsel %vm1004, %v455, 0
    %v1061 = vsel %vm1004, %v695, 0
    %1063 = vmatpush.xpose.msra.mxu0 0.0
    %1064 = vmatpush.xpose.msra.mxu0 0.0
    %1065 = vmatpush.xpose.msra.mxu0 0.0
    %1066 = vmatpush.xpose.msra.mxu0 0.0
    %1067 = vmatpush.xpose.msra.mxu0 0.0
    %1068 = vmatpush.xpose.msra.mxu0 0.0
    %1069 = vmatpush.xpose.msra.mxu0 0.0
    %1070 = vmatpush.xpose.msra.mxu0 0.0
    %1071 = vmatpush.xpose.msra.mxu0 0.0
    %1072 = vmatpush.xpose.msra.mxu0 0.0
    %1073 = vmatpush.xpose.msra.mxu0 0.0
    %1074 = vmatpush.xpose.msra.mxu0 0.0
    %1075 = vmatpush.xpose.msra.mxu0 0.0
    %1076 = vmatpush.xpose.msra.mxu0 0.0
    %1077 = vmatpush.xpose.msra.mxu0 0.0
    %1078 = vmatpush.xpose.msra.mxu0 %v1061
    %1079 = vmatmul.f32.gmra.mxu0 %v1058
    %v1080 = vpop.f32.mrf.mxu0
    %v1081 = vadd.f32 %v1000, %v1080
    %1082 = vdwg.mxu0
    %v1084 = vsel %vm1004, %v457, 0
    %v1087 = vsel %vm1004, %v697, 0
    %1089 = vmatpush.xpose.msra.mxu0 0.0
    %1090 = vmatpush.xpose.msra.mxu0 0.0
    %1091 = vmatpush.xpose.msra.mxu0 0.0
    %1092 = vmatpush.xpose.msra.mxu0 0.0
    %1093 = vmatpush.xpose.msra.mxu0 0.0
    %1094 = vmatpush.xpose.msra.mxu0 0.0
    %1095 = vmatpush.xpose.msra.mxu0 0.0
    %1096 = vmatpush.xpose.msra.mxu0 0.0
    %1097 = vmatpush.xpose.msra.mxu0 0.0
    %1098 = vmatpush.xpose.msra.mxu0 0.0
    %1099 = vmatpush.xpose.msra.mxu0 0.0
    %1100 = vmatpush.xpose.msra.mxu0 0.0
    %1101 = vmatpush.xpose.msra.mxu0 0.0
    %1102 = vmatpush.xpose.msra.mxu0 0.0
    %1103 = vmatpush.xpose.msra.mxu0 0.0
    %1104 = vmatpush.xpose.msra.mxu0 %v1087
    %1105 = vmatmul.f32.gmra.mxu0 %v1084
    %v1106 = vpop.f32.mrf.mxu0
    %v1107 = vadd.f32 %v1000, %v1106
    %1108 = vdwg.mxu0
    %v1110 = vsel %vm1004, %v505, 0
    %v1113 = vsel %vm1004, %v745, 0
    %1115 = vmatpush.xpose.msra.mxu0 0.0
    %1116 = vmatpush.xpose.msra.mxu0 0.0
    %1117 = vmatpush.xpose.msra.mxu0 0.0
    %1118 = vmatpush.xpose.msra.mxu0 0.0
    %1119 = vmatpush.xpose.msra.mxu0 0.0
    %1120 = vmatpush.xpose.msra.mxu0 0.0
    %1121 = vmatpush.xpose.msra.mxu0 0.0
    %1122 = vmatpush.xpose.msra.mxu0 0.0
    %1123 = vmatpush.xpose.msra.mxu0 0.0
    %1124 = vmatpush.xpose.msra.mxu0 0.0
    %1125 = vmatpush.xpose.msra.mxu0 0.0
    %1126 = vmatpush.xpose.msra.mxu0 0.0
    %1127 = vmatpush.xpose.msra.mxu0 0.0
    %1128 = vmatpush.xpose.msra.mxu0 0.0
    %1129 = vmatpush.xpose.msra.mxu0 0.0
    %1130 = vmatpush.xpose.msra.mxu0 %v1113
    %1131 = vmatmul.f32.gmra.mxu0 %v1110
    %v1132 = vpop.f32.mrf.mxu0
    %v1133 = vadd.f32 %v1001, %v1132
    %1134 = vdwg.mxu0
    %v1136 = vsel %vm1004, %v507, 0
    %v1139 = vsel %vm1004, %v747, 0
    %1141 = vmatpush.xpose.msra.mxu0 0.0
    %1142 = vmatpush.xpose.msra.mxu0 0.0
    %1143 = vmatpush.xpose.msra.mxu0 0.0
    %1144 = vmatpush.xpose.msra.mxu0 0.0
    %1145 = vmatpush.xpose.msra.mxu0 0.0
    %1146 = vmatpush.xpose.msra.mxu0 0.0
    %1147 = vmatpush.xpose.msra.mxu0 0.0
    %1148 = vmatpush.xpose.msra.mxu0 0.0
    %1149 = vmatpush.xpose.msra.mxu0 0.0
    %1150 = vmatpush.xpose.msra.mxu0 0.0
    %1151 = vmatpush.xpose.msra.mxu0 0.0
    %1152 = vmatpush.xpose.msra.mxu0 0.0
    %1153 = vmatpush.xpose.msra.mxu0 0.0
    %1154 = vmatpush.xpose.msra.mxu0 0.0
    %1155 = vmatpush.xpose.msra.mxu0 0.0
    %1156 = vmatpush.xpose.msra.mxu0 %v1139
    %1157 = vmatmul.f32.gmra.mxu0 %v1136
    %v1158 = vpop.f32.mrf.mxu0
    %v1159 = vadd.f32 %v1001, %v1158
    %1160 = vdwg.mxu0
    %v1162 = vsel %vm1004, %v509, 0
    %v1165 = vsel %vm1004, %v749, 0
    %1167 = vmatpush.xpose.msra.mxu0 0.0
    %1168 = vmatpush.xpose.msra.mxu0 0.0
    %1169 = vmatpush.xpose.msra.mxu0 0.0
    %1170 = vmatpush.xpose.msra.mxu0 0.0
    %1171 = vmatpush.xpose.msra.mxu0 0.0
    %1172 = vmatpush.xpose.msra.mxu0 0.0
    %1173 = vmatpush.xpose.msra.mxu0 0.0
    %1174 = vmatpush.xpose.msra.mxu0 0.0
    %1175 = vmatpush.xpose.msra.mxu0 0.0
    %1176 = vmatpush.xpose.msra.mxu0 0.0
    %1177 = vmatpush.xpose.msra.mxu0 0.0
    %1178 = vmatpush.xpose.msra.mxu0 0.0
    %1179 = vmatpush.xpose.msra.mxu0 0.0
    %1180 = vmatpush.xpose.msra.mxu0 0.0
    %1181 = vmatpush.xpose.msra.mxu0 0.0
    %1182 = vmatpush.xpose.msra.mxu0 %v1165
    %1183 = vmatmul.f32.gmra.mxu0 %v1162
    %v1184 = vpop.f32.mrf.mxu0
    %v1185 = vadd.f32 %v1001, %v1184
    %1186 = vdwg.mxu0
    %v1188 = vsel %vm1004, %v511, 0
    %v1191 = vsel %vm1004, %v751, 0
    %1193 = vmatpush.xpose.msra.mxu0 0.0
    %1194 = vmatpush.xpose.msra.mxu0 0.0
    %1195 = vmatpush.xpose.msra.mxu0 0.0
    %1196 = vmatpush.xpose.msra.mxu0 0.0
    %1197 = vmatpush.xpose.msra.mxu0 0.0
    %1198 = vmatpush.xpose.msra.mxu0 0.0
    %1199 = vmatpush.xpose.msra.mxu0 0.0
    %1200 = vmatpush.xpose.msra.mxu0 0.0
    %1201 = vmatpush.xpose.msra.mxu0 0.0
    %1202 = vmatpush.xpose.msra.mxu0 0.0
    %1203 = vmatpush.xpose.msra.mxu0 0.0
    %1204 = vmatpush.xpose.msra.mxu0 0.0
    %1205 = vmatpush.xpose.msra.mxu0 0.0
    %1206 = vmatpush.xpose.msra.mxu0 0.0
    %1207 = vmatpush.xpose.msra.mxu0 0.0
    %1208 = vmatpush.xpose.msra.mxu0 %v1191
    %1209 = vmatmul.f32.gmra.mxu0 %v1188
    %v1210 = vpop.f32.mrf.mxu0
    %v1211 = vadd.f32 %v1001, %v1210
    %1212 = vdwg.mxu0
    %v1213 = vsel %vm1004, %v1029, -inf
    %1214 = vmax.xlane.f32.xlu0 %v1213
    %v1215 = vpop.xlane.xlu0 %1214
    %v1216 = vsel %vm1004, %v1055, -inf
    %1217 = vmax.xlane.f32.xlu0 %v1216
    %v1218 = vpop.xlane.xlu0 %1217
    %v1219 = vsel %vm1004, %v1081, -inf
    %1220 = vmax.xlane.f32.xlu0 %v1219
    %v1221 = vpop.xlane.xlu0 %1220
    %v1222 = vsel %vm1004, %v1107, -inf
    %1223 = vmax.xlane.f32.xlu0 %v1222
    %v1224 = vpop.xlane.xlu0 %1223
    %v1225 = vsel %vm1004, %v1133, -inf
    %1226 = vmax.xlane.f32.xlu0 %v1225
    %v1227 = vpop.xlane.xlu0 %1226
    %v1228 = vsel %vm1004, %v1159, -inf
    %1229 = vmax.xlane.f32.xlu0 %v1228
    %v1230 = vpop.xlane.xlu0 %1229
    %v1231 = vsel %vm1004, %v1185, -inf
    %1232 = vmax.xlane.f32.xlu0 %v1231
    %v1233 = vpop.xlane.xlu0 %1232
    %v1234 = vsel %vm1004, %v1211, -inf
    %1235 = vmax.xlane.f32.xlu0 %v1234
    %v1236 = vpop.xlane.xlu0 %1235
    %v1237 = vsub.f32 %v1029, %v1215
    %v1238 = vsub.f32 %v1055, %v1218
    %v1239 = vsub.f32 %v1081, %v1221
    %v1240 = vsub.f32 %v1107, %v1224
    %v1241 = vsub.f32 %v1133, %v1227
    %v1242 = vsub.f32 %v1159, %v1230
    %v1243 = vsub.f32 %v1185, %v1233
    %v1244 = vsub.f32 %v1211, %v1236
    %v1245 = vmul.f32 %v1237, 1.442695
    %v1246 = vpow.pop %v1245
    %v1247 = vmul.f32 %v1238, 1.442695
    %v1248 = vpow.pop %v1247
    %v1249 = vmul.f32 %v1239, 1.442695
    %v1250 = vpow.pop %v1249
    %v1251 = vmul.f32 %v1240, 1.442695
    %v1252 = vpow.pop %v1251
    %v1253 = vmul.f32 %v1241, 1.442695
    %v1254 = vpow.pop %v1253
    %v1255 = vmul.f32 %v1242, 1.442695
    %v1256 = vpow.pop %v1255
    %v1257 = vmul.f32 %v1243, 1.442695
    %v1258 = vpow.pop %v1257
    %v1259 = vmul.f32 %v1244, 1.442695
    %v1260 = vpow.pop %v1259
    %v1261 = vsel %vm1004, %v1246, 0.0
    %1262 = vadd.xlane.f32.xlu0 %v1261
    %v1263 = vpop.xlane.xlu0 %1262
    %v1264 = vsel %vm1004, %v1248, 0.0
    %1265 = vadd.xlane.f32.xlu0 %v1264
    %v1266 = vpop.xlane.xlu0 %1265
    %v1267 = vsel %vm1004, %v1250, 0.0
    %1268 = vadd.xlane.f32.xlu0 %v1267
    %v1269 = vpop.xlane.xlu0 %1268
    %v1270 = vsel %vm1004, %v1252, 0.0
    %1271 = vadd.xlane.f32.xlu0 %v1270
    %v1272 = vpop.xlane.xlu0 %1271
    %v1273 = vsel %vm1004, %v1254, 0.0
    %1274 = vadd.xlane.f32.xlu0 %v1273
    %v1275 = vpop.xlane.xlu0 %1274
    %v1276 = vsel %vm1004, %v1256, 0.0
    %1277 = vadd.xlane.f32.xlu0 %v1276
    %v1278 = vpop.xlane.xlu0 %1277
    %v1279 = vsel %vm1004, %v1258, 0.0
    %1280 = vadd.xlane.f32.xlu0 %v1279
    %v1281 = vpop.xlane.xlu0 %1280
    %v1282 = vsel %vm1004, %v1260, 0.0
    %1283 = vadd.xlane.f32.xlu0 %v1282
    %v1284 = vpop.xlane.xlu0 %1283
    %v1285 = vrcp.pop %v1263
    %v1286 = vmul.f32 %v1263, %v1285
    %v1287 = vsub.f32 1.0, %v1286
    %v1288 = vmul.f32 %v1285, %v1287
    %v1289 = vadd.f32 %v1285, %v1288
    %vm1290 = vweird.f32 %v1263
    %vm1291 = vweird.f32 %v1285
    %vm1292 = vmor %vm1290, %vm1291
    %v1293 = vsel %vm1292, %v1285, %v1289
    %v1294 = vand.u32 2147483647, %v1263
    %vm1295 = vcmp.eq.f32.partialorder %v1294, 8.507059e+37
    %v1296 = vand.u32 %v1263, 2147483648
    %v1297 = vor.u32 1.1754944e-38, %v1296
    %v1298 = vsel %vm1295, %v1297, %v1293
    %v1299 = vmul.f32 %v1246, %v1298
    %v1300 = vrcp.pop %v1266
    %v1301 = vmul.f32 %v1266, %v1300
    %v1302 = vsub.f32 1.0, %v1301
    %v1303 = vmul.f32 %v1300, %v1302
    %v1304 = vadd.f32 %v1300, %v1303
    %vm1305 = vweird.f32 %v1266
    %vm1306 = vweird.f32 %v1300
    %vm1307 = vmor %vm1305, %vm1306
    %v1308 = vsel %vm1307, %v1300, %v1304
    %v1309 = vand.u32 2147483647, %v1266
    %vm1310 = vcmp.eq.f32.partialorder %v1309, 8.507059e+37
    %v1311 = vand.u32 %v1266, 2147483648
    %v1312 = vor.u32 1.1754944e-38, %v1311
    %v1313 = vsel %vm1310, %v1312, %v1308
    %v1314 = vmul.f32 %v1248, %v1313
    %v1315 = vrcp.pop %v1269
    %v1316 = vmul.f32 %v1269, %v1315
    %v1317 = vsub.f32 1.0, %v1316
    %v1318 = vmul.f32 %v1315, %v1317
    %v1319 = vadd.f32 %v1315, %v1318
    %vm1320 = vweird.f32 %v1269
    %vm1321 = vweird.f32 %v1315
    %vm1322 = vmor %vm1320, %vm1321
    %v1323 = vsel %vm1322, %v1315, %v1319
    %v1324 = vand.u32 2147483647, %v1269
    %vm1325 = vcmp.eq.f32.partialorder %v1324, 8.507059e+37
    %v1326 = vand.u32 %v1269, 2147483648
    %v1327 = vor.u32 1.1754944e-38, %v1326
    %v1328 = vsel %vm1325, %v1327, %v1323
    %v1329 = vmul.f32 %v1250, %v1328
    %v1330 = vrcp.pop %v1272
    %v1331 = vmul.f32 %v1272, %v1330
    %v1332 = vsub.f32 1.0, %v1331
    %v1333 = vmul.f32 %v1330, %v1332
    %v1334 = vadd.f32 %v1330, %v1333
    %vm1335 = vweird.f32 %v1272
    %vm1336 = vweird.f32 %v1330
    %vm1337 = vmor %vm1335, %vm1336
    %v1338 = vsel %vm1337, %v1330, %v1334
    %v1339 = vand.u32 2147483647, %v1272
    %vm1340 = vcmp.eq.f32.partialorder %v1339, 8.507059e+37
    %v1341 = vand.u32 %v1272, 2147483648
    %v1342 = vor.u32 1.1754944e-38, %v1341
    %v1343 = vsel %vm1340, %v1342, %v1338
    %v1344 = vmul.f32 %v1252, %v1343
    %v1345 = vrcp.pop %v1275
    %v1346 = vmul.f32 %v1275, %v1345
    %v1347 = vsub.f32 1.0, %v1346
    %v1348 = vmul.f32 %v1345, %v1347
    %v1349 = vadd.f32 %v1345, %v1348
    %vm1350 = vweird.f32 %v1275
    %vm1351 = vweird.f32 %v1345
    %vm1352 = vmor %vm1350, %vm1351
    %v1353 = vsel %vm1352, %v1345, %v1349
    %v1354 = vand.u32 2147483647, %v1275
    %vm1355 = vcmp.eq.f32.partialorder %v1354, 8.507059e+37
    %v1356 = vand.u32 %v1275, 2147483648
    %v1357 = vor.u32 1.1754944e-38, %v1356
    %v1358 = vsel %vm1355, %v1357, %v1353
    %v1359 = vmul.f32 %v1254, %v1358
    %v1360 = vrcp.pop %v1278
    %v1361 = vmul.f32 %v1278, %v1360
    %v1362 = vsub.f32 1.0, %v1361
    %v1363 = vmul.f32 %v1360, %v1362
    %v1364 = vadd.f32 %v1360, %v1363
    %vm1365 = vweird.f32 %v1278
    %vm1366 = vweird.f32 %v1360
    %vm1367 = vmor %vm1365, %vm1366
    %v1368 = vsel %vm1367, %v1360, %v1364
    %v1369 = vand.u32 2147483647, %v1278
    %vm1370 = vcmp.eq.f32.partialorder %v1369, 8.507059e+37
    %v1371 = vand.u32 %v1278, 2147483648
    %v1372 = vor.u32 1.1754944e-38, %v1371
    %v1373 = vsel %vm1370, %v1372, %v1368
    %v1374 = vmul.f32 %v1256, %v1373
    %v1375 = vrcp.pop %v1281
    %v1376 = vmul.f32 %v1281, %v1375
    %v1377 = vsub.f32 1.0, %v1376
    %v1378 = vmul.f32 %v1375, %v1377
    %v1379 = vadd.f32 %v1375, %v1378
    %vm1380 = vweird.f32 %v1281
    %vm1381 = vweird.f32 %v1375
    %vm1382 = vmor %vm1380, %vm1381
    %v1383 = vsel %vm1382, %v1375, %v1379
    %v1384 = vand.u32 2147483647, %v1281
    %vm1385 = vcmp.eq.f32.partialorder %v1384, 8.507059e+37
    %v1386 = vand.u32 %v1281, 2147483648
    %v1387 = vor.u32 1.1754944e-38, %v1386
    %v1388 = vsel %vm1385, %v1387, %v1383
    %v1389 = vmul.f32 %v1258, %v1388
    %v1390 = vrcp.pop %v1284
    %v1391 = vmul.f32 %v1284, %v1390
    %v1392 = vsub.f32 1.0, %v1391
    %v1393 = vmul.f32 %v1390, %v1392
    %v1394 = vadd.f32 %v1390, %v1393
    %vm1395 = vweird.f32 %v1284
    %vm1396 = vweird.f32 %v1390
    %vm1397 = vmor %vm1395, %vm1396
    %v1398 = vsel %vm1397, %v1390, %v1394
    %v1399 = vand.u32 2147483647, %v1284
    %vm1400 = vcmp.eq.f32.partialorder %v1399, 8.507059e+37
    %v1401 = vand.u32 %v1284, 2147483648
    %v1402 = vor.u32 1.1754944e-38, %v1401
    %v1403 = vsel %vm1400, %v1402, %v1398
    %v1404 = vmul.f32 %v1260, %v1403
    %v1406 = vsel %vm1004, %v1299, 0
    %1408 = vmatpush.msra.mxu0 0.0
    %1409 = vmatpush.msra.mxu0 0.0
    %1410 = vmatpush.msra.mxu0 0.0
    %1411 = vmatpush.msra.mxu0 0.0
    %1412 = vmatpush.msra.mxu0 0.0
    %1413 = vmatpush.msra.mxu0 0.0
    %1414 = vmatpush.msra.mxu0 0.0
    %1415 = vmatpush.msra.mxu0 0.0
    %1416 = vmatpush.msra.mxu0 0.0
    %1417 = vmatpush.msra.mxu0 0.0
    %1418 = vmatpush.msra.mxu0 0.0
    %1419 = vmatpush.msra.mxu0 0.0
    %1420 = vmatpush.msra.mxu0 0.0
    %1421 = vmatpush.msra.mxu0 0.0
    %1422 = vmatpush.msra.mxu0 0.0
    %1423 = vmatpush.msra.mxu0 %v931
    %1424 = vmatmul.f32.gmra.mxu0 %v1406
    %v1425 = vpop.f32.mrf.mxu0
    %v1426 = vadd.f32 0.0, %v1425
    %1427 = vdwg.mxu0
    %v1429 = vsel %vm1004, %v1314, 0
    %1431 = vmatpush.msra.mxu0 0.0
    %1432 = vmatpush.msra.mxu0 0.0
    %1433 = vmatpush.msra.mxu0 0.0
    %1434 = vmatpush.msra.mxu0 0.0
    %1435 = vmatpush.msra.mxu0 0.0
    %1436 = vmatpush.msra.mxu0 0.0
    %1437 = vmatpush.msra.mxu0 0.0
    %1438 = vmatpush.msra.mxu0 0.0
    %1439 = vmatpush.msra.mxu0 0.0
    %1440 = vmatpush.msra.mxu0 0.0
    %1441 = vmatpush.msra.mxu0 0.0
    %1442 = vmatpush.msra.mxu0 0.0
    %1443 = vmatpush.msra.mxu0 0.0
    %1444 = vmatpush.msra.mxu0 0.0
    %1445 = vmatpush.msra.mxu0 0.0
    %1446 = vmatpush.msra.mxu0 %v933
    %1447 = vmatmul.f32.gmra.mxu0 %v1429
    %v1448 = vpop.f32.mrf.mxu0
    %v1449 = vadd.f32 0.0, %v1448
    %1450 = vdwg.mxu0
    %v1452 = vsel %vm1004, %v1329, 0
    %1454 = vmatpush.msra.mxu0 0.0
    %1455 = vmatpush.msra.mxu0 0.0
    %1456 = vmatpush.msra.mxu0 0.0
    %1457 = vmatpush.msra.mxu0 0.0
    %1458 = vmatpush.msra.mxu0 0.0
    %1459 = vmatpush.msra.mxu0 0.0
    %1460 = vmatpush.msra.mxu0 0.0
    %1461 = vmatpush.msra.mxu0 0.0
    %1462 = vmatpush.msra.mxu0 0.0
    %1463 = vmatpush.msra.mxu0 0.0
    %1464 = vmatpush.msra.mxu0 0.0
    %1465 = vmatpush.msra.mxu0 0.0
    %1466 = vmatpush.msra.mxu0 0.0
    %1467 = vmatpush.msra.mxu0 0.0
    %1468 = vmatpush.msra.mxu0 0.0
    %1469 = vmatpush.msra.mxu0 %v935
    %1470 = vmatmul.f32.gmra.mxu0 %v1452
    %v1471 = vpop.f32.mrf.mxu0
    %v1472 = vadd.f32 0.0, %v1471
    %1473 = vdwg.mxu0
    %v1475 = vsel %vm1004, %v1344, 0
    %1477 = vmatpush.msra.mxu0 0.0
    %1478 = vmatpush.msra.mxu0 0.0
    %1479 = vmatpush.msra.mxu0 0.0
    %1480 = vmatpush.msra.mxu0 0.0
    %1481 = vmatpush.msra.mxu0 0.0
    %1482 = vmatpush.msra.mxu0 0.0
    %1483 = vmatpush.msra.mxu0 0.0
    %1484 = vmatpush.msra.mxu0 0.0
    %1485 = vmatpush.msra.mxu0 0.0
    %1486 = vmatpush.msra.mxu0 0.0
    %1487 = vmatpush.msra.mxu0 0.0
    %1488 = vmatpush.msra.mxu0 0.0
    %1489 = vmatpush.msra.mxu0 0.0
    %1490 = vmatpush.msra.mxu0 0.0
    %1491 = vmatpush.msra.mxu0 0.0
    %1492 = vmatpush.msra.mxu0 %v937
    %1493 = vmatmul.f32.gmra.mxu0 %v1475
    %v1494 = vpop.f32.mrf.mxu0
    %v1495 = vadd.f32 0.0, %v1494
    %1496 = vdwg.mxu0
    %v1498 = vsel %vm1004, %v1359, 0
    %1500 = vmatpush.msra.mxu0 0.0
    %1501 = vmatpush.msra.mxu0 0.0
    %1502 = vmatpush.msra.mxu0 0.0
    %1503 = vmatpush.msra.mxu0 0.0
    %1504 = vmatpush.msra.mxu0 0.0
    %1505 = vmatpush.msra.mxu0 0.0
    %1506 = vmatpush.msra.mxu0 0.0
    %1507 = vmatpush.msra.mxu0 0.0
    %1508 = vmatpush.msra.mxu0 0.0
    %1509 = vmatpush.msra.mxu0 0.0
    %1510 = vmatpush.msra.mxu0 0.0
    %1511 = vmatpush.msra.mxu0 0.0
    %1512 = vmatpush.msra.mxu0 0.0
    %1513 = vmatpush.msra.mxu0 0.0
    %1514 = vmatpush.msra.mxu0 0.0
    %1515 = vmatpush.msra.mxu0 %v985
    %1516 = vmatmul.f32.gmra.mxu0 %v1498
    %v1517 = vpop.f32.mrf.mxu0
    %v1518 = vadd.f32 0.0, %v1517
    %1519 = vdwg.mxu0
    %v1521 = vsel %vm1004, %v1374, 0
    %1523 = vmatpush.msra.mxu0 0.0
    %1524 = vmatpush.msra.mxu0 0.0
    %1525 = vmatpush.msra.mxu0 0.0
    %1526 = vmatpush.msra.mxu0 0.0
    %1527 = vmatpush.msra.mxu0 0.0
    %1528 = vmatpush.msra.mxu0 0.0
    %1529 = vmatpush.msra.mxu0 0.0
    %1530 = vmatpush.msra.mxu0 0.0
    %1531 = vmatpush.msra.mxu0 0.0
    %1532 = vmatpush.msra.mxu0 0.0
    %1533 = vmatpush.msra.mxu0 0.0
    %1534 = vmatpush.msra.mxu0 0.0
    %1535 = vmatpush.msra.mxu0 0.0
    %1536 = vmatpush.msra.mxu0 0.0
    %1537 = vmatpush.msra.mxu0 0.0
    %1538 = vmatpush.msra.mxu0 %v987
    %1539 = vmatmul.f32.gmra.mxu0 %v1521
    %v1540 = vpop.f32.mrf.mxu0
    %v1541 = vadd.f32 0.0, %v1540
    %1542 = vdwg.mxu0
    %v1544 = vsel %vm1004, %v1389, 0
    %1546 = vmatpush.msra.mxu0 0.0
    %1547 = vmatpush.msra.mxu0 0.0
    %1548 = vmatpush.msra.mxu0 0.0
    %1549 = vmatpush.msra.mxu0 0.0
    %1550 = vmatpush.msra.mxu0 0.0
    %1551 = vmatpush.msra.mxu0 0.0
    %1552 = vmatpush.msra.mxu0 0.0
    %1553 = vmatpush.msra.mxu0 0.0
    %1554 = vmatpush.msra.mxu0 0.0
    %1555 = vmatpush.msra.mxu0 0.0
    %1556 = vmatpush.msra.mxu0 0.0
    %1557 = vmatpush.msra.mxu0 0.0
    %1558 = vmatpush.msra.mxu0 0.0
    %1559 = vmatpush.msra.mxu0 0.0
    %1560 = vmatpush.msra.mxu0 0.0
    %1561 = vmatpush.msra.mxu0 %v989
    %1562 = vmatmul.f32.gmra.mxu0 %v1544
    %v1563 = vpop.f32.mrf.mxu0
    %v1564 = vadd.f32 0.0, %v1563
    %1565 = vdwg.mxu0
    %v1567 = vsel %vm1004, %v1404, 0
    %1569 = vmatpush.msra.mxu0 0.0
    %1570 = vmatpush.msra.mxu0 0.0
    %1571 = vmatpush.msra.mxu0 0.0
    %1572 = vmatpush.msra.mxu0 0.0
    %1573 = vmatpush.msra.mxu0 0.0
    %1574 = vmatpush.msra.mxu0 0.0
    %1575 = vmatpush.msra.mxu0 0.0
    %1576 = vmatpush.msra.mxu0 0.0
    %1577 = vmatpush.msra.mxu0 0.0
    %1578 = vmatpush.msra.mxu0 0.0
    %1579 = vmatpush.msra.mxu0 0.0
    %1580 = vmatpush.msra.mxu0 0.0
    %1581 = vmatpush.msra.mxu0 0.0
    %1582 = vmatpush.msra.mxu0 0.0
    %1583 = vmatpush.msra.mxu0 0.0
    %1584 = vmatpush.msra.mxu0 %v991
    %1585 = vmatmul.f32.gmra.mxu0 %v1567
    %v1586 = vpop.f32.mrf.mxu0
    %v1587 = vadd.f32 0.0, %v1586
    %1588 = vdwg.mxu0
    %v1589 = vrot.slane %v1472, 4
    %v1590 = vsel %vm292, %v1589, %v1426
    %v1591 = vrot.slane %v1426, 4
    %v1592 = vsel %vm292, %v1472, %v1591
    %v1594 = vunpack.c.l.s4 1983009808
    %v1595 = vunpack.c.0.s8 %v1594
    %v1596 = vperm.slane %v1590, %v1595
    %v1598 = vunpack.c.l.s4 1983009808
    %v1599 = vunpack.c.0.s8 %v1598
    %v1600 = vperm.slane %v1592, %v1599
    %v1601 = vrot.slane %v1495, 4
    %v1602 = vsel %vm292, %v1601, %v1449
    %v1603 = vrot.slane %v1449, 4
    %v1604 = vsel %vm292, %v1495, %v1603
    %v1606 = vunpack.c.l.s4 1983009808
    %v1607 = vunpack.c.0.s8 %v1606
    %v1608 = vperm.slane %v1602, %v1607
    %v1610 = vunpack.c.l.s4 1983009808
    %v1611 = vunpack.c.0.s8 %v1610
    %v1612 = vperm.slane %v1604, %v1611
    %v1613 = vrot.slane %v1608, 4
    %v1614 = vsel %vm292, %v1613, %v1596
    %v1615 = vrot.slane %v1596, 4
    %v1616 = vsel %vm292, %v1608, %v1615
    %v1618 = vunpack.c.l.s4 1934713408
    %v1619 = vunpack.c.0.s8 %v1618
    %v1620 = vperm.slane %v1614, %v1619
    %v1622 = vunpack.c.l.s4 1934713408
    %v1623 = vunpack.c.0.s8 %v1622
    %v1624 = vperm.slane %v1616, %v1623
    %v1625 = vrot.slane %v1612, 4
    %v1626 = vsel %vm292, %v1625, %v1600
    %v1627 = vrot.slane %v1600, 4
    %v1628 = vsel %vm292, %v1612, %v1627
    %v1630 = vunpack.c.l.s4 1934713408
    %v1631 = vunpack.c.0.s8 %v1630
    %v1632 = vperm.slane %v1626, %v1631
    %v1634 = vunpack.c.l.s4 1934713408
    %v1635 = vunpack.c.0.s8 %v1634
    %v1636 = vperm.slane %v1628, %v1635
    %v1637 = vrot.slane %v1620, 4
    %v1638 = vsel %vm292, 0.0, %v1637
    %v1639 = vrot.slane %v1624, 4
    %v1640 = vsel %vm292, 0.0, %v1639
    %v1641 = vrot.slane %v1632, 4
    %v1642 = vsel %vm292, 0.0, %v1641
    %v1643 = vrot.slane %v1636, 4
    %v1644 = vsel %vm292, 0.0, %v1643
    %v1645 = vrot.slane %v1564, 4
    %v1646 = vsel %vm292, %v1645, %v1518
    %v1647 = vrot.slane %v1518, 4
    %v1648 = vsel %vm292, %v1564, %v1647
    %v1650 = vunpack.c.l.s4 1983009808
    %v1651 = vunpack.c.0.s8 %v1650
    %v1652 = vperm.slane %v1646, %v1651
    %v1654 = vunpack.c.l.s4 1983009808
    %v1655 = vunpack.c.0.s8 %v1654
    %v1656 = vperm.slane %v1648, %v1655
    %v1657 = vrot.slane %v1587, 4
    %v1658 = vsel %vm292, %v1657, %v1541
    %v1659 = vrot.slane %v1541, 4
    %v1660 = vsel %vm292, %v1587, %v1659
    %v1662 = vunpack.c.l.s4 1983009808
    %v1663 = vunpack.c.0.s8 %v1662
    %v1664 = vperm.slane %v1658, %v1663
    %v1666 = vunpack.c.l.s4 1983009808
    %v1667 = vunpack.c.0.s8 %v1666
    %v1668 = vperm.slane %v1660, %v1667
    %v1669 = vrot.slane %v1664, 4
    %v1670 = vsel %vm292, %v1669, %v1652
    %v1671 = vrot.slane %v1652, 4
    %v1672 = vsel %vm292, %v1664, %v1671
    %v1674 = vunpack.c.l.s4 1934713408
    %v1675 = vunpack.c.0.s8 %v1674
    %v1676 = vperm.slane %v1670, %v1675
    %v1678 = vunpack.c.l.s4 1934713408
    %v1679 = vunpack.c.0.s8 %v1678
    %v1680 = vperm.slane %v1672, %v1679
    %v1681 = vrot.slane %v1668, 4
    %v1682 = vsel %vm292, %v1681, %v1656
    %v1683 = vrot.slane %v1656, 4
    %v1684 = vsel %vm292, %v1668, %v1683
    %v1686 = vunpack.c.l.s4 1934713408
    %v1687 = vunpack.c.0.s8 %v1686
    %v1688 = vperm.slane %v1682, %v1687
    %v1690 = vunpack.c.l.s4 1934713408
    %v1691 = vunpack.c.0.s8 %v1690
    %v1692 = vperm.slane %v1684, %v1691
    %v1693 = vrot.slane %v1676, 4
    %v1694 = vsel %vm292, 0.0, %v1693
    %v1695 = vrot.slane %v1680, 4
    %v1696 = vsel %vm292, 0.0, %v1695
    %v1697 = vrot.slane %v1688, 4
    %v1698 = vsel %vm292, 0.0, %v1697
    %v1699 = vrot.slane %v1692, 4
    %v1700 = vsel %vm292, 0.0, %v1699
    %v1701 = vsel %vm292, %v1639, %v1620
    %v1703 = vunpack.c.l.s4 1983009808
    %v1704 = vunpack.c.0.s8 %v1703
    %v1705 = vperm.slane %v1701, %v1704
    %v1706 = vrot.slane %v1640, 4
    %v1707 = vsel %vm292, %v1706, %v1638
    %v1709 = vunpack.c.l.s4 1983009808
    %v1710 = vunpack.c.0.s8 %v1709
    %v1711 = vperm.slane %v1707, %v1710
    %v1712 = vsel %vm292, %v1643, %v1632
    %v1714 = vunpack.c.l.s4 1983009808
    %v1715 = vunpack.c.0.s8 %v1714
    %v1716 = vperm.slane %v1712, %v1715
    %v1717 = vrot.slane %v1644, 4
    %v1718 = vsel %vm292, %v1717, %v1642
    %v1720 = vunpack.c.l.s4 1983009808
    %v1721 = vunpack.c.0.s8 %v1720
    %v1722 = vperm.slane %v1718, %v1721
    %v1723 = vrot.slane %v1711, 4
    %v1724 = vsel %vm292, %v1723, %v1705
    %v1725 = vrot.slane %v1705, 4
    %v1726 = vsel %vm292, %v1711, %v1725
    %v1728 = vunpack.c.l.s4 1934713408
    %v1729 = vunpack.c.0.s8 %v1728
    %v1730 = vperm.slane %v1724, %v1729
    %v1732 = vunpack.c.l.s4 1934713408
    %v1733 = vunpack.c.0.s8 %v1732
    %v1734 = vperm.slane %v1726, %v1733
    %v1735 = vrot.slane %v1722, 4
    %v1736 = vsel %vm292, %v1735, %v1716
    %v1737 = vrot.slane %v1716, 4
    %v1738 = vsel %vm292, %v1722, %v1737
    %v1740 = vunpack.c.l.s4 1934713408
    %v1741 = vunpack.c.0.s8 %v1740
    %v1742 = vperm.slane %v1736, %v1741
    %v1744 = vunpack.c.l.s4 1934713408
    %v1745 = vunpack.c.0.s8 %v1744
    %v1746 = vperm.slane %v1738, %v1745
    %v1747 = vrot.slane %v1742, 4
    %v1748 = vsel %vm292, %v1747, %v1730
    %v1749 = vrot.slane %v1730, 4
    %v1750 = vsel %vm292, %v1742, %v1749
    %v1751 = vrot.slane %v1746, 4
    %v1752 = vsel %vm292, %v1751, %v1734
    %v1753 = vrot.slane %v1734, 4
    %v1754 = vsel %vm292, %v1746, %v1753
    %v1755 = vsel %vm292, %v1695, %v1676
    %v1757 = vunpack.c.l.s4 1983009808
    %v1758 = vunpack.c.0.s8 %v1757
    %v1759 = vperm.slane %v1755, %v1758
    %v1760 = vrot.slane %v1696, 4
    %v1761 = vsel %vm292, %v1760, %v1694
    %v1763 = vunpack.c.l.s4 1983009808
    %v1764 = vunpack.c.0.s8 %v1763
    %v1765 = vperm.slane %v1761, %v1764
    %v1766 = vsel %vm292, %v1699, %v1688
    %v1768 = vunpack.c.l.s4 1983009808
    %v1769 = vunpack.c.0.s8 %v1768
    %v1770 = vperm.slane %v1766, %v1769
    %v1771 = vrot.slane %v1700, 4
    %v1772 = vsel %vm292, %v1771, %v1698
    %v1774 = vunpack.c.l.s4 1983009808
    %v1775 = vunpack.c.0.s8 %v1774
    %v1776 = vperm.slane %v1772, %v1775
    %v1777 = vrot.slane %v1765, 4
    %v1778 = vsel %vm292, %v1777, %v1759
    %v1779 = vrot.slane %v1759, 4
    %v1780 = vsel %vm292, %v1765, %v1779
    %v1782 = vunpack.c.l.s4 1934713408
    %v1783 = vunpack.c.0.s8 %v1782
    %v1784 = vperm.slane %v1778, %v1783
    %v1786 = vunpack.c.l.s4 1934713408
    %v1787 = vunpack.c.0.s8 %v1786
    %v1788 = vperm.slane %v1780, %v1787
    %v1789 = vrot.slane %v1776, 4
    %v1790 = vsel %vm292, %v1789, %v1770
    %v1791 = vrot.slane %v1770, 4
    %v1792 = vsel %vm292, %v1776, %v1791
    %v1794 = vunpack.c.l.s4 1934713408
    %v1795 = vunpack.c.0.s8 %v1794
    %v1796 = vperm.slane %v1790, %v1795
    %v1798 = vunpack.c.l.s4 1934713408
    %v1799 = vunpack.c.0.s8 %v1798
    %v1800 = vperm.slane %v1792, %v1799
    %v1801 = vrot.slane %v1796, 4
    %v1802 = vsel %vm292, %v1801, %v1784
    %v1803 = vrot.slane %v1784, 4
    %v1804 = vsel %vm292, %v1796, %v1803
    %v1805 = vrot.slane %v1800, 4
    %v1806 = vsel %vm292, %v1805, %v1788
    %v1807 = vrot.slane %v1788, 4
    %v1808 = vsel %vm292, %v1800, %v1807
    %1811 = vrot.lane.b32.xlu0 %v1750, 8
    %v1812 = vpop.permute.xlu0 %1811
    %1813 = vrot.lane.b32.xlu0 %v1804, 8
    %v1814 = vpop.permute.xlu0 %1813
    %1819 = vrot.lane.b32.xlu0 %v1752, 16
    %v1820 = vpop.permute.xlu0 %1819
    %1821 = vrot.lane.b32.xlu0 %v1806, 16
    %v1822 = vpop.permute.xlu0 %1821
    %1827 = vrot.lane.b32.xlu0 %v1754, 24
    %v1828 = vpop.permute.xlu0 %1827
    %1829 = vrot.lane.b32.xlu0 %v1808, 24
    %v1830 = vpop.permute.xlu0 %1829
    %v1833 = vsel %vm1004, %v1748, %v1812
    %v1834 = vsel %vm1004, %v1802, %v1814
    %vm1835 = vcmask 130048
    %v1836 = vsel %vm1835, %v1833, %v1820
    %v1837 = vsel %vm1835, %v1834, %v1822
    %vm1838 = vcmask 195584
    %v1839 = vsel %vm1838, %v1836, %v1828
    %v1840 = vsel %vm1838, %v1837, %v1830
    %v1841 = vld [vmem:[#allocation13] sm:$0xff]
    %v1842 = vld [vmem:[#allocation13 + $0x8] sm:$0xff]
    %v1843 = vld [vmem:[#allocation13 + $0x10] sm:$0xff]
    %v1844 = vld [vmem:[#allocation13 + $0x18] sm:$0xff]
    %v1845 = vld [vmem:[%s11] sm:$0x1]
    %v1847 = vperm.slane %v1845, 0
    %v1850 = vsel %vm161, %v1839, 0
    %v1853 = vsel %vm161, %v1840, 0
    %1855 = vmatpush.msra.mxu0 0.0
    %1856 = vmatpush.msra.mxu0 0.0
    %1857 = vmatpush.msra.mxu0 0.0
    %1858 = vmatpush.msra.mxu0 0.0
    %1859 = vmatpush.msra.mxu0 0.0
    %1860 = vmatpush.msra.mxu0 0.0
    %1861 = vmatpush.msra.mxu0 0.0
    %1862 = vmatpush.msra.mxu0 0.0
    %1863 = vmatpush.msra.mxu0 0.0
    %1864 = vmatpush.msra.mxu0 0.0
    %1865 = vmatpush.msra.mxu0 0.0
    %1866 = vmatpush.msra.mxu0 0.0
    %1867 = vmatpush.msra.mxu0 %v1844
    %1868 = vmatpush.msra.mxu0 %v1843
    %1869 = vmatpush.msra.mxu0 %v1842
    %1870 = vmatpush.msra.mxu0 %v1841
    %1871 = vmatmul.f32.gmra.mxu0 %v1850
    %v1872 = vpop.f32.mrf.mxu0
    %v1873 = vadd.f32 %v1847, %v1872
    %1874 = vmatmul.f32.gmra.mxu0 %v1853
    %v1875 = vpop.f32.mrf.mxu0
    %v1876 = vadd.f32 %v1847, %v1875
    %1877 = vdwg.mxu0
    %1878 = vst.msk [vmem:[#allocation14] sm:$0xff] %vm161, %v1873
    %1879 = vst.msk [vmem:[#allocation14 + $0x8] sm:$0xff] %vm161, %v1876
    // Predicated region
    $region78: #{tpu_custom_call.1} parent=1 // pred_check
      _
    $region79: #{tpu_custom_call.1} parent=1 // pred_check_branch
      %1881 = sbr.rel (0) target = $region81
    $region80: #{tpu_custom_call.1} parent=1 // pred_region
      %1883 = vsyncadd [#allocation4], 0
      %s1884 = sshll.u32 [#allocation14], 4
      %s1885 = int_to_ptr.vmem [resolvable:$true] %s1884
      %s1886 = sshll.u32 %s12, 4
      %s1887 = int_to_ptr.hbm [resolvable:$true] %s1886
      %1892 = dma.vmem_to_hbm [thread:$0]  %s1885, 256, %s1887, [#allocation4], 128, 128, 8
    $region81: #{tpu_custom_call.1} parent=1 // pred_fallthru
      _
    // Predicated region
    $region82: #{tpu_custom_call.1} parent=1 // pred_check
      _
    $region83: #{tpu_custom_call.1} parent=1 // pred_check_branch
      %1894 = sbr.rel (0) target = $region85
    $region84: #{tpu_custom_call.1} parent=1 // pred_region
      %1896 = dma.done [#allocation4], 256
    $region85: #{tpu_custom_call.1} parent=1 // pred_fallthru
      _
    %1897 = vsyncpa [#allocation3], 1
    %1898 = vsyncpa [#allocation6], 1
    %1899 = vsyncpa [#allocation9], 1
    %1900 = vsyncpa [#allocation12], 1
    %1901 = vsyncpa [#allocation4], 1

</llo_original>
